<compile_context>
chip_gen: v6e
topology: v6e:2x2x1
jax: 0.10.0
libtpu: 0.0.40
codegen_flags: <defaults>
</compile_context>

<pallas_src>
import math

import jax
import jax.numpy as jnp
import numpy as np
from jax import lax
from jax.experimental import pallas as pl
from jax.experimental.pallas import tpu as pltpu


# ----------------------------------------------------------------------------
# Fused Pallas kernel
# ----------------------------------------------------------------------------
def dangerordr_fused_kernel(x_ref, w1_ref, psel_ref, b1_ref, w2_ref, b2_ref,
                            fc1w_ref, fc1b_ref, fc2w_ref, fc2b_ref,
                            fc3w_ref, fc3b_ref, out_ref):
    f32 = jnp.float32
    x = x_ref[0]                                    # (28, 28) single channel

    # ---- conv1 (1->6, k=5): 5 kernel-row Toeplitz matmuls into ONE (24,256)
    #      accumulator; lanes [0:72] = even output cols, [128:200] = odd ----
    d1 = jnp.dot(x[0:24, :], w1_ref[0], preferred_element_type=f32)
    for kh in range(1, 5):
        d1 = d1 + jnp.dot(x[kh:kh + 24, :], w1_ref[kh],
                          preferred_element_type=f32)

    # horizontal half of MaxPool2d(2,2): aligned 128-lane slice max
    mm = jnp.maximum(d1[:, :128], d1[:, 128:])      # (24, 128)

    # vertical half: deinterleave rows with one tiny matmul (rows 0..11 = even
    # conv rows, 12..23 = odd), then one whole-tile max; bias + ReLU after the
    # max is equivalent (bias constant per pooling window).
    sel = jnp.dot(psel_ref[...], mm, preferred_element_type=f32)   # (24, 128)
    fm1 = jnp.maximum(jnp.maximum(sel[:12, :], sel[12:, :]) + b1_ref[...], 0.0)
    # fm1[wi, 6*wj + c] == ReLU(MaxPool(Conv1))[c, wi, wj]; lanes 72..127 == 0

    # ---- conv2 (6->16, k=5): ONE dot.  K folds the 5 kernel-row shifts as
    #      five 128-lane-aligned blocks of the pooled conv1 map. ----
    lhs2 = jnp.concatenate([fm1[kh:kh + 8, :] for kh in range(5)], axis=1)
    d2 = jnp.dot(lhs2, w2_ref[...], preferred_element_type=f32)    # (8, 256)

    am = jnp.maximum(d2[:, :128], d2[:, 128:])      # horizontal pool  (8, 128)
    g2 = jnp.maximum(am + b2_ref[...], 0.0)         # bias+ReLU (commutes w/ max)
    # g2[i, 16*pj + o] == ReLU(conv2 + b)[o, i, 2*pj (pooled cols)]; lanes>=64 == 0

    # vertical pool + NCHW flatten folded into the fc1 LHS: (1, 4*128)
    h_in = jnp.concatenate(
        [jnp.maximum(g2[2 * pi:2 * pi + 1, :], g2[2 * pi + 1:2 * pi + 2, :])
         for pi in range(4)], axis=1)               # (1, 512)

    # ---- classifier tail (fc1 is a single dot; flatten lives in fc1w layout) ----
    h1 = jnp.maximum(jnp.dot(h_in, fc1w_ref[...], preferred_element_type=f32)
                     + fc1b_ref[...], 0.0)
    h2 = jnp.maximum(jnp.dot(h1, fc2w_ref[...], preferred_element_type=f32)
                     + fc2b_ref[...], 0.0)
    z = jnp.dot(h2, fc3w_ref[...], preferred_element_type=f32) + fc3b_ref[...]
    out_ref[...] = jax.nn.sigmoid(z).astype(out_ref.dtype)


# ----------------------------------------------------------------------------
# pallas_call wrapper (no grid: ~1.1 MiB total, trivially fits VMEM)
# ----------------------------------------------------------------------------
def dangerordr_cnn_forward(x, kp):
    """x: (1, 28, 28) float32 -> (1, N) sigmoid probabilities."""
    n_out = kp["fc3w"].shape[1]
    vmem = lambda: pl.BlockSpec(memory_space=pltpu.MemorySpace.VMEM)
    return pl.pallas_call(
        dangerordr_fused_kernel,
        out_shape=jax.ShapeDtypeStruct((1, n_out), jnp.float32),
        in_specs=[vmem() for _ in range(12)],
        out_specs=vmem(),
        cost_estimate=pl.CostEstimate(flops=4_600_000, transcendentals=4,
                                      bytes_accessed=1_150_000),
    )(x, kp["w1k"], kp["psel"], kp["b1l"], kp["w2k"], kp["b2l"],
      kp["fc1k"], kp["fc1b"], kp["fc2w"], kp["fc2b"], kp["fc3w"], kp["fc3b"])


# ----------------------------------------------------------------------------
# Host-side repacking of PyTorch-layout weights into kernel layouts
# ----------------------------------------------------------------------------
def pack_params(p):
    w1 = np.asarray(p["w1"], np.float32)            # (6, 1, 5, 5)
    b1 = np.asarray(p["b1"], np.float32)            # (6,)
    w2 = np.asarray(p["w2"], np.float32)            # (16, 6, 5, 5)
    b2 = np.asarray(p["b2"], np.float32)            # (16,)
    fc1w = np.asarray(p["fc1w"], np.float32)        # (256, 120), row = o*16+pi*4+pj

    # conv1 Toeplitz slabs, one per kernel row kh (merged even/odd halves):
    #   lane 6*wj + c        <- output col j = 2*wj   , input col = 2*wj + kw
    #   lane 128 + 6*wj + c  <- output col j = 2*wj+1 , input col = 2*wj+1+kw
    w1k = np.zeros((5, 28, 256), np.float32)
    for kh in range(5):
        for wj in range(12):
            for kw in range(5):
                w1k[kh, 2 * wj + kw, 6 * wj:6 * wj + 6] = w1[:, 0, kh, kw]
                w1k[kh, 2 * wj + 1 + kw,
                    128 + 6 * wj:128 + 6 * wj + 6] = w1[:, 0, kh, kw]

    # Row-deinterleave matrix for the conv1 vertical pool:
    #   (psel @ mm)[wi] = mm[2*wi],  (psel @ mm)[12+wi] = mm[2*wi+1]
    psel = np.zeros((24, 24), np.float32)
    for wi in range(12):
        psel[wi, 2 * wi] = 1.0
        psel[12 + wi, 2 * wi + 1] = 1.0

    # conv2 weight, K = 5 aligned 128-lane blocks (fm1 lane layout 6*wj'+c):
    #   row 128*kh + 6*wj' + c ; even cols 16*pj+o (wj'=2*pj+kw),
    #                            odd cols 128+16*pj+o (wj'=2*pj+1+kw)
    w2k = np.zeros((640, 256), np.float32)
    for kh in range(5):
        for pj in range(4):
            for kw in range(5):
                for c in range(6):
                    w2k[128 * kh + 6 * (2 * pj + kw) + c,
                        16 * pj:16 * pj + 16] = w2[:, c, kh, kw]
                    w2k[128 * kh + 6 * (2 * pj + 1 + kw) + c,
                        128 + 16 * pj:128 + 16 * pj + 16] = w2[:, c, kh, kw]

    # fc1 weight: kernel LHS lane 128*pi + 16*pj + o  <->  torch flatten index
    # o*16 + pi*4 + pj; rows for the zero pad lanes (>=64 per block) stay zero.
    fc1k = np.zeros((512, 120), np.float32)
    for pi in range(4):
        for pj in range(4):
            for o in range(16):
                fc1k[128 * pi + 16 * pj + o, :] = fc1w[o * 16 + pi * 4 + pj, :]

    b1l = np.zeros((1, 128), np.float32)
    b1l[0, :72] = np.tile(b1, 12)
    b2l = np.zeros((1, 128), np.float32)
    b2l[0, :64] = np.tile(b2, 4)

    return dict(
        w1k=jnp.asarray(w1k), psel=jnp.asarray(psel), b1l=jnp.asarray(b1l),
        w2k=jnp.asarray(w2k), b2l=jnp.asarray(b2l),
        fc1k=jnp.asarray(fc1k),
        fc1b=jnp.asarray(p["fc1b"]).reshape(1, -1),
        fc2w=jnp.asarray(p["fc2w"]),
        fc2b=jnp.asarray(p["fc2b"]).reshape(1, -1),
        fc3w=jnp.asarray(p["fc3w"]),
        fc3b=jnp.asarray(p["fc3b"]).reshape(1, -1),
    )


# ----------------------------------------------------------------------------
# Pure-JAX reference (correctness check only)
# ----------------------------------------------------------------------------
def reference_forward(x, p):
    xb = x[None]  # (1, 1, 28, 28)

    def conv(v, w, b):
        y = lax.conv_general_dilated(
            v, w, (1, 1), "VALID",
            dimension_numbers=("NCHW", "OIHW", "NCHW"))
        return y + b[None, :, None, None]

    def pool(v):
        return lax.reduce_window(v, -jnp.inf, lax.max,
                                 (1, 1, 2, 2), (1, 1, 2, 2), "VALID")

    h = jax.nn.relu(pool(conv(xb, p["w1"], p["b1"])))
    h = jax.nn.relu(pool(conv(h, p["w2"], p["b2"])))
    h = h.reshape(1, 256)
    h = jax.nn.relu(h @ p["fc1w"] + p["fc1b"])
    h = jax.nn.relu(h @ p["fc2w"] + p["fc2b"])
    return jax.nn.sigmoid(h @ p["fc3w"] + p["fc3b"])


# ----------------------------------------------------------------------------
# Deterministic parameter init (PyTorch-style uniform bounds)
# ----------------------------------------------------------------------------
def init_params(key, n_classes=1):
    ks = jax.random.split(key, 10)

    def u(k, shape, fan_in):
        bound = 1.0 / math.sqrt(fan_in)
        return jax.random.uniform(k, shape, jnp.float32, -bound, bound)

    return dict(
        w1=u(ks[0], (6, 1, 5, 5), 25),   b1=u(ks[1], (6,), 25),
        w2=u(ks[2], (16, 6, 5, 5), 150), b2=u(ks[3], (16,), 150),
        fc1w=u(ks[4], (256, 120), 256),  fc1b=u(ks[5], (120,), 256),
        fc2w=u(ks[6], (120, 84), 120),   fc2b=u(ks[7], (84,), 120),
        fc3w=u(ks[8], (84, n_classes), 84), fc3b=u(ks[9], (n_classes,), 84),
    )


if __name__ == "__main__":
    N = 1  # output classes (module default)
    key = jax.random.PRNGKey(0)
    pkey, xkey = jax.random.split(key)

    params = init_params(pkey, n_classes=N)
    kparams = pack_params(params)

    # size=16*4*4 implies a 28x28 spatial input; module expects (C=1, H, W)
    x = jax.random.normal(xkey, (1, 28, 28), dtype=jnp.float32)

    out = jax.jit(dangerordr_cnn_forward)(x, kparams)
    out = jax.block_until_ready(out)
    assert out.shape == (1, N), out.shape

    ref = jax.block_until_ready(reference_forward(x, params))
    np.testing.assert_allclose(np.asarray(out), np.asarray(ref),
                               rtol=1e-3, atol=2e-3)

    print("KERNEL_OK")
</pallas_src>

<mosaic_0001>
module attributes {stable_mosaic.version = 11 : i64} {
  func.func @dangerordr_fused_kernel(%arg0: memref<1x28x28xf32, #tpu.memory_space<vmem>>, %arg1: memref<5x28x256xf32, #tpu.memory_space<vmem>>, %arg2: memref<24x24xf32, #tpu.memory_space<vmem>>, %arg3: memref<1x128xf32, #tpu.memory_space<vmem>>, %arg4: memref<640x256xf32, #tpu.memory_space<vmem>>, %arg5: memref<1x128xf32, #tpu.memory_space<vmem>>, %arg6: memref<512x120xf32, #tpu.memory_space<vmem>>, %arg7: memref<1x120xf32, #tpu.memory_space<vmem>>, %arg8: memref<120x84xf32, #tpu.memory_space<vmem>>, %arg9: memref<1x84xf32, #tpu.memory_space<vmem>>, %arg10: memref<84x1xf32, #tpu.memory_space<vmem>>, %arg11: memref<1x1xf32, #tpu.memory_space<vmem>>, %arg12: memref<1x1xf32, #tpu.memory_space<vmem>>) attributes {dimension_semantics = [], scalar_prefetch = 0 : i64, scratch_operands = 0 : i64, tpu.core_type = #tpu.core_type<tc>} {
    %c0 = arith.constant 0 : index
    %c0_0 = arith.constant 0 : index
    %c0_1 = arith.constant 0 : index
    %0 = vector.load %arg0[%c0, %c0_0, %c0_1] : memref<1x28x28xf32, #tpu.memory_space<vmem>>, vector<1x28x28xf32>
    %1 = vector.shape_cast %0 : vector<1x28x28xf32> to vector<28x28xf32>
    %2 = vector.extract_strided_slice %1 {offsets = [0, 0], sizes = [24, 28], strides = [1, 1]} : vector<28x28xf32> to vector<24x28xf32>
    %c0_2 = arith.constant 0 : index
    %c0_3 = arith.constant 0 : index
    %c0_4 = arith.constant 0 : index
    %3 = vector.load %arg1[%c0_2, %c0_3, %c0_4] : memref<5x28x256xf32, #tpu.memory_space<vmem>>, vector<1x28x256xf32>
    %4 = vector.shape_cast %3 : vector<1x28x256xf32> to vector<28x256xf32>
    %cst = arith.constant dense<0.000000e+00> : vector<24x256xf32>
    %5 = tpu.matmul %2, %4, %cst {dimension_numbers = #tpu.dot_dimension_numbers<[1], [0], [0], [1], [0, 0, 1, 1], [], []>} : vector<24x28xf32>, vector<28x256xf32>, vector<24x256xf32> -> vector<24x256xf32>
    %6 = vector.extract_strided_slice %1 {offsets = [1, 0], sizes = [24, 28], strides = [1, 1]} : vector<28x28xf32> to vector<24x28xf32>
    %c1 = arith.constant 1 : index
    %c0_5 = arith.constant 0 : index
    %c0_6 = arith.constant 0 : index
    %7 = vector.load %arg1[%c1, %c0_5, %c0_6] : memref<5x28x256xf32, #tpu.memory_space<vmem>>, vector<1x28x256xf32>
    %8 = vector.shape_cast %7 : vector<1x28x256xf32> to vector<28x256xf32>
    %cst_7 = arith.constant dense<0.000000e+00> : vector<24x256xf32>
    %9 = tpu.matmul %6, %8, %cst_7 {dimension_numbers = #tpu.dot_dimension_numbers<[1], [0], [0], [1], [0, 0, 1, 1], [], []>} : vector<24x28xf32>, vector<28x256xf32>, vector<24x256xf32> -> vector<24x256xf32>
    %10 = arith.addf %5, %9 : vector<24x256xf32>
    %11 = vector.extract_strided_slice %1 {offsets = [2, 0], sizes = [24, 28], strides = [1, 1]} : vector<28x28xf32> to vector<24x28xf32>
    %c2 = arith.constant 2 : index
    %c0_8 = arith.constant 0 : index
    %c0_9 = arith.constant 0 : index
    %12 = vector.load %arg1[%c2, %c0_8, %c0_9] : memref<5x28x256xf32, #tpu.memory_space<vmem>>, vector<1x28x256xf32>
    %13 = vector.shape_cast %12 : vector<1x28x256xf32> to vector<28x256xf32>
    %cst_10 = arith.constant dense<0.000000e+00> : vector<24x256xf32>
    %14 = tpu.matmul %11, %13, %cst_10 {dimension_numbers = #tpu.dot_dimension_numbers<[1], [0], [0], [1], [0, 0, 1, 1], [], []>} : vector<24x28xf32>, vector<28x256xf32>, vector<24x256xf32> -> vector<24x256xf32>
    %15 = arith.addf %10, %14 : vector<24x256xf32>
    %16 = vector.extract_strided_slice %1 {offsets = [3, 0], sizes = [24, 28], strides = [1, 1]} : vector<28x28xf32> to vector<24x28xf32>
    %c3 = arith.constant 3 : index
    %c0_11 = arith.constant 0 : index
    %c0_12 = arith.constant 0 : index
    %17 = vector.load %arg1[%c3, %c0_11, %c0_12] : memref<5x28x256xf32, #tpu.memory_space<vmem>>, vector<1x28x256xf32>
    %18 = vector.shape_cast %17 : vector<1x28x256xf32> to vector<28x256xf32>
    %cst_13 = arith.constant dense<0.000000e+00> : vector<24x256xf32>
    %19 = tpu.matmul %16, %18, %cst_13 {dimension_numbers = #tpu.dot_dimension_numbers<[1], [0], [0], [1], [0, 0, 1, 1], [], []>} : vector<24x28xf32>, vector<28x256xf32>, vector<24x256xf32> -> vector<24x256xf32>
    %20 = arith.addf %15, %19 : vector<24x256xf32>
    %21 = vector.extract_strided_slice %1 {offsets = [4, 0], sizes = [24, 28], strides = [1, 1]} : vector<28x28xf32> to vector<24x28xf32>
    %c4 = arith.constant 4 : index
    %c0_14 = arith.constant 0 : index
    %c0_15 = arith.constant 0 : index
    %22 = vector.load %arg1[%c4, %c0_14, %c0_15] : memref<5x28x256xf32, #tpu.memory_space<vmem>>, vector<1x28x256xf32>
    %23 = vector.shape_cast %22 : vector<1x28x256xf32> to vector<28x256xf32>
    %cst_16 = arith.constant dense<0.000000e+00> : vector<24x256xf32>
    %24 = tpu.matmul %21, %23, %cst_16 {dimension_numbers = #tpu.dot_dimension_numbers<[1], [0], [0], [1], [0, 0, 1, 1], [], []>} : vector<24x28xf32>, vector<28x256xf32>, vector<24x256xf32> -> vector<24x256xf32>
    %25 = arith.addf %20, %24 : vector<24x256xf32>
    %26 = vector.extract_strided_slice %25 {offsets = [0, 0], sizes = [24, 128], strides = [1, 1]} : vector<24x256xf32> to vector<24x128xf32>
    %27 = vector.extract_strided_slice %25 {offsets = [0, 128], sizes = [24, 128], strides = [1, 1]} : vector<24x256xf32> to vector<24x128xf32>
    %28 = arith.maximumf %26, %27 : vector<24x128xf32>
    %c0_17 = arith.constant 0 : index
    %c0_18 = arith.constant 0 : index
    %29 = vector.load %arg2[%c0_17, %c0_18] : memref<24x24xf32, #tpu.memory_space<vmem>>, vector<24x24xf32>
    %cst_19 = arith.constant dense<0.000000e+00> : vector<24x128xf32>
    %30 = tpu.matmul %29, %28, %cst_19 {dimension_numbers = #tpu.dot_dimension_numbers<[1], [0], [0], [1], [0, 0, 1, 1], [], []>} : vector<24x24xf32>, vector<24x128xf32>, vector<24x128xf32> -> vector<24x128xf32>
    %31 = vector.extract_strided_slice %30 {offsets = [0, 0], sizes = [12, 128], strides = [1, 1]} : vector<24x128xf32> to vector<12x128xf32>
    %32 = vector.extract_strided_slice %30 {offsets = [12, 0], sizes = [12, 128], strides = [1, 1]} : vector<24x128xf32> to vector<12x128xf32>
    %33 = arith.maximumf %31, %32 : vector<12x128xf32>
    %c0_20 = arith.constant 0 : index
    %c0_21 = arith.constant 0 : index
    %34 = vector.load %arg3[%c0_20, %c0_21] : memref<1x128xf32, #tpu.memory_space<vmem>>, vector<1x128xf32>
    %35 = vector.broadcast %34 : vector<1x128xf32> to vector<12x128xf32>
    %36 = arith.addf %33, %35 : vector<12x128xf32>
    %cst_22 = arith.constant 0.000000e+00 : f32
    %37 = vector.broadcast %cst_22 : f32 to vector<12x128xf32>
    %38 = arith.maximumf %36, %37 : vector<12x128xf32>
    %39 = vector.extract_strided_slice %38 {offsets = [0, 0], sizes = [8, 128], strides = [1, 1]} : vector<12x128xf32> to vector<8x128xf32>
    %40 = vector.extract_strided_slice %38 {offsets = [1, 0], sizes = [8, 128], strides = [1, 1]} : vector<12x128xf32> to vector<8x128xf32>
    %41 = vector.extract_strided_slice %38 {offsets = [2, 0], sizes = [8, 128], strides = [1, 1]} : vector<12x128xf32> to vector<8x128xf32>
    %42 = vector.extract_strided_slice %38 {offsets = [3, 0], sizes = [8, 128], strides = [1, 1]} : vector<12x128xf32> to vector<8x128xf32>
    %43 = vector.extract_strided_slice %38 {offsets = [4, 0], sizes = [8, 128], strides = [1, 1]} : vector<12x128xf32> to vector<8x128xf32>
    %44 = tpu.concatenate %39, %40, %41, %42, %43 in 1 : vector<8x128xf32>, vector<8x128xf32>, vector<8x128xf32>, vector<8x128xf32>, vector<8x128xf32> -> vector<8x640xf32>
    %c0_23 = arith.constant 0 : index
    %c0_24 = arith.constant 0 : index
    %45 = vector.load %arg4[%c0_23, %c0_24] : memref<640x256xf32, #tpu.memory_space<vmem>>, vector<640x256xf32>
    %cst_25 = arith.constant dense<0.000000e+00> : vector<8x256xf32>
    %46 = tpu.matmul %44, %45, %cst_25 {dimension_numbers = #tpu.dot_dimension_numbers<[1], [0], [0], [1], [0, 0, 1, 1], [], []>} : vector<8x640xf32>, vector<640x256xf32>, vector<8x256xf32> -> vector<8x256xf32>
    %47 = vector.extract_strided_slice %46 {offsets = [0, 0], sizes = [8, 128], strides = [1, 1]} : vector<8x256xf32> to vector<8x128xf32>
    %48 = vector.extract_strided_slice %46 {offsets = [0, 128], sizes = [8, 128], strides = [1, 1]} : vector<8x256xf32> to vector<8x128xf32>
    %49 = arith.maximumf %47, %48 : vector<8x128xf32>
    %c0_26 = arith.constant 0 : index
    %c0_27 = arith.constant 0 : index
    %50 = vector.load %arg5[%c0_26, %c0_27] : memref<1x128xf32, #tpu.memory_space<vmem>>, vector<1x128xf32>
    %51 = vector.broadcast %50 : vector<1x128xf32> to vector<8x128xf32>
    %52 = arith.addf %49, %51 : vector<8x128xf32>
    %cst_28 = arith.constant 0.000000e+00 : f32
    %53 = vector.broadcast %cst_28 : f32 to vector<8x128xf32>
    %54 = arith.maximumf %52, %53 : vector<8x128xf32>
    %55 = vector.extract_strided_slice %54 {offsets = [0, 0], sizes = [1, 128], strides = [1, 1]} : vector<8x128xf32> to vector<1x128xf32>
    %56 = vector.extract_strided_slice %54 {offsets = [1, 0], sizes = [1, 128], strides = [1, 1]} : vector<8x128xf32> to vector<1x128xf32>
    %57 = arith.maximumf %55, %56 : vector<1x128xf32>
    %58 = vector.extract_strided_slice %54 {offsets = [2, 0], sizes = [1, 128], strides = [1, 1]} : vector<8x128xf32> to vector<1x128xf32>
    %59 = vector.extract_strided_slice %54 {offsets = [3, 0], sizes = [1, 128], strides = [1, 1]} : vector<8x128xf32> to vector<1x128xf32>
    %60 = arith.maximumf %58, %59 : vector<1x128xf32>
    %61 = vector.extract_strided_slice %54 {offsets = [4, 0], sizes = [1, 128], strides = [1, 1]} : vector<8x128xf32> to vector<1x128xf32>
    %62 = vector.extract_strided_slice %54 {offsets = [5, 0], sizes = [1, 128], strides = [1, 1]} : vector<8x128xf32> to vector<1x128xf32>
    %63 = arith.maximumf %61, %62 : vector<1x128xf32>
    %64 = vector.extract_strided_slice %54 {offsets = [6, 0], sizes = [1, 128], strides = [1, 1]} : vector<8x128xf32> to vector<1x128xf32>
    %65 = vector.extract_strided_slice %54 {offsets = [7, 0], sizes = [1, 128], strides = [1, 1]} : vector<8x128xf32> to vector<1x128xf32>
    %66 = arith.maximumf %64, %65 : vector<1x128xf32>
    %67 = tpu.concatenate %57, %60, %63, %66 in 1 : vector<1x128xf32>, vector<1x128xf32>, vector<1x128xf32>, vector<1x128xf32> -> vector<1x512xf32>
    %c0_29 = arith.constant 0 : index
    %c0_30 = arith.constant 0 : index
    %68 = vector.load %arg6[%c0_29, %c0_30] : memref<512x120xf32, #tpu.memory_space<vmem>>, vector<512x120xf32>
    %cst_31 = arith.constant dense<0.000000e+00> : vector<1x120xf32>
    %69 = tpu.matmul %67, %68, %cst_31 {dimension_numbers = #tpu.dot_dimension_numbers<[1], [0], [0], [1], [0, 0, 1, 1], [], []>} : vector<1x512xf32>, vector<512x120xf32>, vector<1x120xf32> -> vector<1x120xf32>
    %c0_32 = arith.constant 0 : index
    %c0_33 = arith.constant 0 : index
    %70 = vector.load %arg7[%c0_32, %c0_33] : memref<1x120xf32, #tpu.memory_space<vmem>>, vector<1x120xf32>
    %71 = arith.addf %69, %70 : vector<1x120xf32>
    %cst_34 = arith.constant 0.000000e+00 : f32
    %72 = vector.broadcast %cst_34 : f32 to vector<1x120xf32>
    %73 = arith.maximumf %71, %72 : vector<1x120xf32>
    %c0_35 = arith.constant 0 : index
    %c0_36 = arith.constant 0 : index
    %74 = vector.load %arg8[%c0_35, %c0_36] : memref<120x84xf32, #tpu.memory_space<vmem>>, vector<120x84xf32>
    %cst_37 = arith.constant dense<0.000000e+00> : vector<1x84xf32>
    %75 = tpu.matmul %73, %74, %cst_37 {dimension_numbers = #tpu.dot_dimension_numbers<[1], [0], [0], [1], [0, 0, 1, 1], [], []>} : vector<1x120xf32>, vector<120x84xf32>, vector<1x84xf32> -> vector<1x84xf32>
    %c0_38 = arith.constant 0 : index
    %c0_39 = arith.constant 0 : index
    %76 = vector.load %arg9[%c0_38, %c0_39] : memref<1x84xf32, #tpu.memory_space<vmem>>, vector<1x84xf32>
    %77 = arith.addf %75, %76 : vector<1x84xf32>
    %cst_40 = arith.constant 0.000000e+00 : f32
    %78 = vector.broadcast %cst_40 : f32 to vector<1x84xf32>
    %79 = arith.maximumf %77, %78 : vector<1x84xf32>
    %c0_41 = arith.constant 0 : index
    %c0_42 = arith.constant 0 : index
    %80 = vector.load %arg10[%c0_41, %c0_42] : memref<84x1xf32, #tpu.memory_space<vmem>>, vector<84x1xf32>
    %cst_43 = arith.constant dense<0.000000e+00> : vector<1x1xf32>
    %81 = tpu.matmul %79, %80, %cst_43 {dimension_numbers = #tpu.dot_dimension_numbers<[1], [0], [0], [1], [0, 0, 1, 1], [], []>} : vector<1x84xf32>, vector<84x1xf32>, vector<1x1xf32> -> vector<1x1xf32>
    %c0_44 = arith.constant 0 : index
    %c0_45 = arith.constant 0 : index
    %82 = vector.load %arg11[%c0_44, %c0_45] : memref<1x1xf32, #tpu.memory_space<vmem>>, vector<1x1xf32>
    %83 = arith.addf %81, %82 : vector<1x1xf32>
    %84 = arith.negf %83 : vector<1x1xf32>
    %85 = math.exp %84 : vector<1x1xf32>
    %cst_46 = arith.constant 1.000000e+00 : f32
    %86 = vector.broadcast %cst_46 : f32 to vector<1x1xf32>
    %87 = arith.addf %86, %85 : vector<1x1xf32>
    %88 = arith.divf %86, %87 : vector<1x1xf32>
    %c0_47 = arith.constant 0 : index
    %c0_48 = arith.constant 0 : index
    %89 = vector.load %arg12[%c0_47, %c0_48] : memref<1x1xf32, #tpu.memory_space<vmem>>, vector<1x1xf32>
    tpu.vector_store %arg12[%c0_47, %c0_48], %88 {strides = array<i32>} : memref<1x1xf32, #tpu.memory_space<vmem>>, vector<1x1xf32>,
    return
  }
}

</mosaic_0001>

<llo_original>
// kernel: dangerordr_cnn_forward.1
$region0: #{dangerordr_cnn_forward.1}
  #allocation0 [shape = 'u32[]', space=smem, size = 0x4, offset = 0x4, fixed_abs, tag = 'smem constant byte address 0x4 - core index']
  #allocation1 [shape = 'u32[144,128]{1,0:T(1,128)}', space=vmem, size = 0x12000, scoped, tag = 'internal scratch']
  #allocation2 [shape = 'f32[1,1]{1,0:T(1,128)S(1)}', space=vmem, size = 0x200, scoped, tag = 'scoped memory for dangerordr_cnn_forward.1']
  %s0 = inlined_call_operand.vmem [shape: f32[1,28,28], index: 0, kind: input, shape index: {}]
  %s1 = inlined_call_operand.hbm [shape: f32[5,28,256], index: 1, kind: input, shape index: {}]
  %s2 = inlined_call_operand.vmem [shape: f32[24,24], index: 2, kind: input, shape index: {}]
  %s3 = inlined_call_operand.vmem [shape: f32[1,128], index: 3, kind: input, shape index: {}]
  %s4 = inlined_call_operand.vmem [shape: f32[640,256], index: 4, kind: input, shape index: {}]
  %s5 = inlined_call_operand.vmem [shape: f32[1,128], index: 5, kind: input, shape index: {}]
  %s6 = inlined_call_operand.vmem [shape: f32[512,120], index: 6, kind: input, shape index: {}]
  %s7 = inlined_call_operand.vmem [shape: f32[1,120], index: 7, kind: input, shape index: {}]
  %s8 = inlined_call_operand.vmem [shape: f32[120,84], index: 8, kind: input, shape index: {}]
  %s9 = inlined_call_operand.vmem [shape: f32[1,84], index: 9, kind: input, shape index: {}]
  %s10 = inlined_call_operand.vmem [shape: f32[84,1], index: 10, kind: input, shape index: {}]
  %s11 = inlined_call_operand.<no memory space> [shape: f32[1,1], index: 11, kind: input, shape index: {}]
  %s12 = inlined_call_operand.hbm [shape: f32[1,1], index: 12, kind: output, shape index: {}]
  %s13 = sld [smem:[#allocation0]]
  $region62: #{dangerordr_cnn_forward.1} parent=0
    _
  %s15 = ssub.s32 1, %s13
  %s16 = scalar_select 0, %s15, %s13
  %v17 = vstv %s11
  %18 = vst [vmem:[#allocation2] sm:$0x1] %v17
  $region1: #{dangerordr_cnn_forward.1} parent=0
    #allocation3 [shape = 'u8[163840]{0}', space=vmem, size = 0x28000, scoped, tag = 'input window, operand 1, single buffered']
    #allocation4 [shape = 's32[1]{0}', space=sflag, size = 0x4, scoped, tag = 'scoped memory for dangerordr_cnn_forward.1']
    #allocation5 [shape = 's32[1]{0}', space=sflag, size = 0x4, scoped, tag = 'scoped memory for dangerordr_cnn_forward.1']
    #allocation6 [shape = 'u8[512]{0}', space=vmem, size = 0x400, scoped, tag = 'output window, operand 0, single buffered']
    %19 = vsyncpa [#allocation4], 0
    %20 = vsyncpa [#allocation5], 0
    // Predicated region
    $region2: #{dangerordr_cnn_forward.1} parent=1 // pred_check
      _
    $region3: #{dangerordr_cnn_forward.1} parent=1 // pred_check_branch
      %22 = sbr.rel (0) target = $region5
    $region4: #{dangerordr_cnn_forward.1} parent=1 // pred_region
      _
    $region5: #{dangerordr_cnn_forward.1} parent=1 // pred_fallthru
      _
    // Predicated region
    $region6: #{dangerordr_cnn_forward.1} parent=1 // pred_check
      _
    $region7: #{dangerordr_cnn_forward.1} parent=1 // pred_check_branch
      %24 = sbr.rel (0) target = $region9
    $region8: #{dangerordr_cnn_forward.1} parent=1 // pred_region
      %s26 = ssub.s32 5120, 5120
      %27 = vsyncadd [#allocation4], %s26
      %s28 = sshll.u32 [#allocation3], 4
      %s29 = int_to_ptr.vmem [resolvable:$true] %s28
      %34 = dma.hbm_to_vmem [thread:$0]  %s1, 5120, %s29, [#allocation4], 256, 256, 16
    $region9: #{dangerordr_cnn_forward.1} parent=1 // pred_fallthru
      _
    // Predicated region
    $region10: #{dangerordr_cnn_forward.1} parent=1 // pred_check
      _
    $region11: #{dangerordr_cnn_forward.1} parent=1 // pred_check_branch
      %36 = sbr.rel (0) target = $region13
    $region12: #{dangerordr_cnn_forward.1} parent=1 // pred_region
      _
    $region13: #{dangerordr_cnn_forward.1} parent=1 // pred_fallthru
      _
    // Predicated region
    $region14: #{dangerordr_cnn_forward.1} parent=1 // pred_check
      _
    $region15: #{dangerordr_cnn_forward.1} parent=1 // pred_check_branch
      %38 = sbr.rel (0) target = $region17
    $region16: #{dangerordr_cnn_forward.1} parent=1 // pred_region
      _
    $region17: #{dangerordr_cnn_forward.1} parent=1 // pred_fallthru
      _
    // Predicated region
    $region18: #{dangerordr_cnn_forward.1} parent=1 // pred_check
      _
    $region19: #{dangerordr_cnn_forward.1} parent=1 // pred_check_branch
      %40 = sbr.rel (0) target = $region21
    $region20: #{dangerordr_cnn_forward.1} parent=1 // pred_region
      _
    $region21: #{dangerordr_cnn_forward.1} parent=1 // pred_fallthru
      _
    // Predicated region
    $region22: #{dangerordr_cnn_forward.1} parent=1 // pred_check
      _
    $region23: #{dangerordr_cnn_forward.1} parent=1 // pred_check_branch
      %42 = sbr.rel (0) target = $region25
    $region24: #{dangerordr_cnn_forward.1} parent=1 // pred_region
      _
    $region25: #{dangerordr_cnn_forward.1} parent=1 // pred_fallthru
      _
    // Predicated region
    $region26: #{dangerordr_cnn_forward.1} parent=1 // pred_check
      _
    $region27: #{dangerordr_cnn_forward.1} parent=1 // pred_check_branch
      %44 = sbr.rel (0) target = $region29
    $region28: #{dangerordr_cnn_forward.1} parent=1 // pred_region
      _
    $region29: #{dangerordr_cnn_forward.1} parent=1 // pred_fallthru
      _
    // Predicated region
    $region30: #{dangerordr_cnn_forward.1} parent=1 // pred_check
      _
    $region31: #{dangerordr_cnn_forward.1} parent=1 // pred_check_branch
      %46 = sbr.rel (0) target = $region33
    $region32: #{dangerordr_cnn_forward.1} parent=1 // pred_region
      _
    $region33: #{dangerordr_cnn_forward.1} parent=1 // pred_fallthru
      _
    // Predicated region
    $region34: #{dangerordr_cnn_forward.1} parent=1 // pred_check
      _
    $region35: #{dangerordr_cnn_forward.1} parent=1 // pred_check_branch
      %48 = sbr.rel (0) target = $region37
    $region36: #{dangerordr_cnn_forward.1} parent=1 // pred_region
      _
    $region37: #{dangerordr_cnn_forward.1} parent=1 // pred_fallthru
      _
    // Predicated region
    $region38: #{dangerordr_cnn_forward.1} parent=1 // pred_check
      _
    $region39: #{dangerordr_cnn_forward.1} parent=1 // pred_check_branch
      %50 = sbr.rel (0) target = $region41
    $region40: #{dangerordr_cnn_forward.1} parent=1 // pred_region
      _
    $region41: #{dangerordr_cnn_forward.1} parent=1 // pred_fallthru
      _
    // Predicated region
    $region42: #{dangerordr_cnn_forward.1} parent=1 // pred_check
      _
    $region43: #{dangerordr_cnn_forward.1} parent=1 // pred_check_branch
      %52 = sbr.rel (0) target = $region45
    $region44: #{dangerordr_cnn_forward.1} parent=1 // pred_region
      _
    $region45: #{dangerordr_cnn_forward.1} parent=1 // pred_fallthru
      _
    // Predicated region
    $region46: #{dangerordr_cnn_forward.1} parent=1 // pred_check
      _
    $region47: #{dangerordr_cnn_forward.1} parent=1 // pred_check_branch
      %54 = sbr.rel (0) target = $region49
    $region48: #{dangerordr_cnn_forward.1} parent=1 // pred_region
      _
    $region49: #{dangerordr_cnn_forward.1} parent=1 // pred_fallthru
      _
    // Predicated region
    $region50: #{dangerordr_cnn_forward.1} parent=1 // pred_check
      _
    $region51: #{dangerordr_cnn_forward.1} parent=1 // pred_check_branch
      %56 = sbr.rel (0) target = $region53
    $region52: #{dangerordr_cnn_forward.1} parent=1 // pred_region
      %57 = dma.done [#allocation4], 5120
    $region53: #{dangerordr_cnn_forward.1} parent=1 // pred_fallthru
      _
    %v58 = vld [vmem:[%s0] sm:$0xff]
    %v59 = vld [vmem:[%s0 + $0x8] sm:$0xff]
    %v60 = vld [vmem:[%s0 + $0x10] sm:$0xff]
    %v61 = vld [vmem:[%s0 + $0x18] sm:$0xf]
    %v62 = vld [vmem:[#allocation3] sm:$0xff]
    %v63 = vld [vmem:[#allocation3 + $0x8] sm:$0xff]
    %v64 = vld [vmem:[#allocation3 + $0x10] sm:$0xff]
    %v65 = vld [vmem:[#allocation3 + $0x18] sm:$0xff]
    %v66 = vld [vmem:[#allocation3 + $0x20] sm:$0xff]
    %v67 = vld [vmem:[#allocation3 + $0x28] sm:$0xff]
    %v68 = vld [vmem:[#allocation3 + $0x30] sm:$0xf]
    %v69 = vld [vmem:[#allocation3 + $0x38] sm:$0xf]
    %s70 = scalar_lea.vmem [#allocation3], 64
    %v71 = vld [vmem:[%s70] sm:$0xff]
    %v72 = vld [vmem:[%s70 + $0x8] sm:$0xff]
    %v73 = vld [vmem:[%s70 + $0x10] sm:$0xff]
    %v74 = vld [vmem:[%s70 + $0x18] sm:$0xff]
    %v75 = vld [vmem:[%s70 + $0x20] sm:$0xff]
    %v76 = vld [vmem:[%s70 + $0x28] sm:$0xff]
    %v77 = vld [vmem:[%s70 + $0x30] sm:$0xf]
    %v78 = vld [vmem:[%s70 + $0x38] sm:$0xf]
    %vm83 = vcmask 1046528
    %v84 = vrot.slane %v58, 1
    %v85 = vrot.slane %v59, 1
    %v86 = vsel %vm83, %v84, %v85
    %v87 = vrot.slane %v60, 1
    %v88 = vsel %vm83, %v85, %v87
    %v89 = vrot.slane %v61, 1
    %v90 = vsel %vm83, %v87, %v89
    %vm91 = vcmask 228352
    %v92 = vsel %vm91, %v86, 0
    %v94 = vsel %vm91, %v88, 0
    %v96 = vsel %vm91, %v90, 0
    %vm98 = vcmask 1043456
    %v100 = vsel %vm98, %v77, 0
    %v103 = vsel %vm98, %v78, 0
    %105 = vmatprep.subr.mxu0 0.0
    %106 = vmatpush1.msra.mxu0 0.0
    %107 = vmatprep.subr.mxu0 0.0
    %108 = vmatpush1.msra.mxu0 0.0
    %109 = vmatprep.subr.mxu0 0.0
    %110 = vmatpush1.msra.mxu0 0.0
    %111 = vmatprep.subr.mxu0 0.0
    %112 = vmatpush1.msra.mxu0 0.0
    %113 = vmatprep.subr.mxu0 0.0
    %114 = vmatpush1.msra.mxu0 0.0
    %115 = vmatprep.subr.mxu0 0.0
    %116 = vmatpush1.msra.mxu0 0.0
    %117 = vmatprep.subr.mxu0 0.0
    %118 = vmatpush1.msra.mxu0 0.0
    %119 = vmatprep.subr.mxu0 0.0
    %120 = vmatpush1.msra.mxu0 0.0
    %121 = vmatprep.subr.mxu0 0.0
    %122 = vmatpush1.msra.mxu0 0.0
    %123 = vmatprep.subr.mxu0 0.0
    %124 = vmatpush1.msra.mxu0 0.0
    %125 = vmatprep.subr.mxu0 0.0
    %126 = vmatpush1.msra.mxu0 0.0
    %127 = vmatprep.subr.mxu0 0.0
    %128 = vmatpush1.msra.mxu0 0.0
    %129 = vmatprep.subr.mxu0 %v103
    %130 = vmatpush1.msra.mxu0 %v100
    %131 = vmatprep.subr.mxu0 %v76
    %132 = vmatpush1.msra.mxu0 %v75
    %133 = vmatprep.subr.mxu0 %v74
    %134 = vmatpush1.msra.mxu0 %v73
    %135 = vmatprep.subr.mxu0 %v72
    %136 = vmatpush1.msra.mxu0 %v71
    %137 = vmatprep.subr.mxu0 0.0
    %138 = vmatpush2.msra.mxu0 0.0
    %139 = vmatprep.subr.mxu0 0.0
    %140 = vmatpush2.msra.mxu0 0.0
    %141 = vmatprep.subr.mxu0 0.0
    %142 = vmatpush2.msra.mxu0 0.0
    %143 = vmatprep.subr.mxu0 0.0
    %144 = vmatpush2.msra.mxu0 0.0
    %145 = vmatprep.subr.mxu0 0.0
    %146 = vmatpush2.msra.mxu0 0.0
    %147 = vmatprep.subr.mxu0 0.0
    %148 = vmatpush2.msra.mxu0 0.0
    %149 = vmatprep.subr.mxu0 0.0
    %150 = vmatpush2.msra.mxu0 0.0
    %151 = vmatprep.subr.mxu0 0.0
    %152 = vmatpush2.msra.mxu0 0.0
    %153 = vmatprep.subr.mxu0 0.0
    %154 = vmatpush2.msra.mxu0 0.0
    %155 = vmatprep.subr.mxu0 0.0
    %156 = vmatpush2.msra.mxu0 0.0
    %157 = vmatprep.subr.mxu0 0.0
    %158 = vmatpush2.msra.mxu0 0.0
    %159 = vmatprep.subr.mxu0 0.0
    %160 = vmatpush2.msra.mxu0 0.0
    %161 = vmatprep.subr.mxu0 0.0
    %162 = vmatpush2.msra.mxu0 0.0
    %163 = vmatprep.subr.mxu0 0.0
    %164 = vmatpush2.msra.mxu0 0.0
    %165 = vmatprep.subr.mxu0 0.0
    %166 = vmatpush2.msra.mxu0 0.0
    %167 = vmatprep.subr.mxu0 0.0
    %168 = vmatpush2.msra.mxu0 0.0
    %169 = vmatprep.mubr.f32.mxu0 0.0
    %170 = vmatmul.mubr.f32.gmra.mxu0 %v92
    %v171 = vpop.f32.mrf.mxu0
    %v172 = vadd.f32 0.0, %v171
    %v173 = vpop.f32.mrf.mxu0
    %v174 = vadd.f32 0.0, %v173
    %175 = vmatprep.mubr.f32.mxu0 0.0
    %176 = vmatmul.mubr.f32.gmra.mxu0 %v94
    %v177 = vpop.f32.mrf.mxu0
    %v178 = vadd.f32 0.0, %v177
    %v179 = vpop.f32.mrf.mxu0
    %v180 = vadd.f32 0.0, %v179
    %181 = vmatprep.mubr.f32.mxu0 0.0
    %182 = vmatmul.mubr.f32.gmra.mxu0 %v96
    %v183 = vpop.f32.mrf.mxu0
    %v184 = vadd.f32 0.0, %v183
    %v185 = vpop.f32.mrf.mxu0
    %v186 = vadd.f32 0.0, %v185
    %187 = vdwg.mxu0
    %v188 = vsel %vm91, %v58, 0
    %v190 = vsel %vm91, %v59, 0
    %v192 = vsel %vm91, %v60, 0
    %v195 = vsel %vm98, %v68, 0
    %v198 = vsel %vm98, %v69, 0
    %200 = vmatprep.subr.mxu0 0.0
    %201 = vmatpush1.msra.mxu0 0.0
    %202 = vmatprep.subr.mxu0 0.0
    %203 = vmatpush1.msra.mxu0 0.0
    %204 = vmatprep.subr.mxu0 0.0
    %205 = vmatpush1.msra.mxu0 0.0
    %206 = vmatprep.subr.mxu0 0.0
    %207 = vmatpush1.msra.mxu0 0.0
    %208 = vmatprep.subr.mxu0 0.0
    %209 = vmatpush1.msra.mxu0 0.0
    %210 = vmatprep.subr.mxu0 0.0
    %211 = vmatpush1.msra.mxu0 0.0
    %212 = vmatprep.subr.mxu0 0.0
    %213 = vmatpush1.msra.mxu0 0.0
    %214 = vmatprep.subr.mxu0 0.0
    %215 = vmatpush1.msra.mxu0 0.0
    %216 = vmatprep.subr.mxu0 0.0
    %217 = vmatpush1.msra.mxu0 0.0
    %218 = vmatprep.subr.mxu0 0.0
    %219 = vmatpush1.msra.mxu0 0.0
    %220 = vmatprep.subr.mxu0 0.0
    %221 = vmatpush1.msra.mxu0 0.0
    %222 = vmatprep.subr.mxu0 0.0
    %223 = vmatpush1.msra.mxu0 0.0
    %224 = vmatprep.subr.mxu0 %v198
    %225 = vmatpush1.msra.mxu0 %v195
    %226 = vmatprep.subr.mxu0 %v67
    %227 = vmatpush1.msra.mxu0 %v66
    %228 = vmatprep.subr.mxu0 %v65
    %229 = vmatpush1.msra.mxu0 %v64
    %230 = vmatprep.subr.mxu0 %v63
    %231 = vmatpush1.msra.mxu0 %v62
    %232 = vmatprep.subr.mxu0 0.0
    %233 = vmatpush2.msra.mxu0 0.0
    %234 = vmatprep.subr.mxu0 0.0
    %235 = vmatpush2.msra.mxu0 0.0
    %236 = vmatprep.subr.mxu0 0.0
    %237 = vmatpush2.msra.mxu0 0.0
    %238 = vmatprep.subr.mxu0 0.0
    %239 = vmatpush2.msra.mxu0 0.0
    %240 = vmatprep.subr.mxu0 0.0
    %241 = vmatpush2.msra.mxu0 0.0
    %242 = vmatprep.subr.mxu0 0.0
    %243 = vmatpush2.msra.mxu0 0.0
    %244 = vmatprep.subr.mxu0 0.0
    %245 = vmatpush2.msra.mxu0 0.0
    %246 = vmatprep.subr.mxu0 0.0
    %247 = vmatpush2.msra.mxu0 0.0
    %248 = vmatprep.subr.mxu0 0.0
    %249 = vmatpush2.msra.mxu0 0.0
    %250 = vmatprep.subr.mxu0 0.0
    %251 = vmatpush2.msra.mxu0 0.0
    %252 = vmatprep.subr.mxu0 0.0
    %253 = vmatpush2.msra.mxu0 0.0
    %254 = vmatprep.subr.mxu0 0.0
    %255 = vmatpush2.msra.mxu0 0.0
    %256 = vmatprep.subr.mxu0 0.0
    %257 = vmatpush2.msra.mxu0 0.0
    %258 = vmatprep.subr.mxu0 0.0
    %259 = vmatpush2.msra.mxu0 0.0
    %260 = vmatprep.subr.mxu0 0.0
    %261 = vmatpush2.msra.mxu0 0.0
    %262 = vmatprep.subr.mxu0 0.0
    %263 = vmatpush2.msra.mxu0 0.0
    %264 = vmatprep.mubr.f32.mxu0 0.0
    %265 = vmatmul.mubr.f32.gmra.mxu0 %v188
    %v266 = vpop.f32.mrf.mxu0
    %v267 = vadd.f32 %v172, %v266
    %v268 = vpop.f32.mrf.mxu0
    %v269 = vadd.f32 %v174, %v268
    %270 = vmatprep.mubr.f32.mxu0 0.0
    %271 = vmatmul.mubr.f32.gmra.mxu0 %v190
    %v272 = vpop.f32.mrf.mxu0
    %v273 = vadd.f32 %v178, %v272
    %v274 = vpop.f32.mrf.mxu0
    %v275 = vadd.f32 %v180, %v274
    %276 = vmatprep.mubr.f32.mxu0 0.0
    %277 = vmatmul.mubr.f32.gmra.mxu0 %v192
    %v278 = vpop.f32.mrf.mxu0
    %v279 = vadd.f32 %v184, %v278
    %v280 = vpop.f32.mrf.mxu0
    %v281 = vadd.f32 %v186, %v280
    %282 = vdwg.mxu0
    %s283 = scalar_lea.vmem [#allocation3], 128
    %v284 = vld [vmem:[%s283] sm:$0xff]
    %v285 = vld [vmem:[%s283 + $0x8] sm:$0xff]
    %v286 = vld [vmem:[%s283 + $0x10] sm:$0xff]
    %v287 = vld [vmem:[%s283 + $0x18] sm:$0xff]
    %v288 = vld [vmem:[%s283 + $0x20] sm:$0xff]
    %v289 = vld [vmem:[%s283 + $0x28] sm:$0xff]
    %v290 = vld [vmem:[%s283 + $0x30] sm:$0xf]
    %v291 = vld [vmem:[%s283 + $0x38] sm:$0xf]
    %vm292 = vcmask 1045504
    %v293 = vrot.slane %v58, 2
    %v294 = vrot.slane %v59, 2
    %v295 = vsel %vm292, %v293, %v294
    %v296 = vrot.slane %v60, 2
    %v297 = vsel %vm292, %v294, %v296
    %v298 = vrot.slane %v61, 2
    %v299 = vsel %vm292, %v296, %v298
    %v300 = vsel %vm91, %v295, 0
    %v302 = vsel %vm91, %v297, 0
    %v304 = vsel %vm91, %v299, 0
    %v307 = vsel %vm98, %v290, 0
    %v310 = vsel %vm98, %v291, 0
    %312 = vmatprep.subr.mxu0 0.0
    %313 = vmatpush1.msra.mxu0 0.0
    %314 = vmatprep.subr.mxu0 0.0
    %315 = vmatpush1.msra.mxu0 0.0
    %316 = vmatprep.subr.mxu0 0.0
    %317 = vmatpush1.msra.mxu0 0.0
    %318 = vmatprep.subr.mxu0 0.0
    %319 = vmatpush1.msra.mxu0 0.0
    %320 = vmatprep.subr.mxu0 0.0
    %321 = vmatpush1.msra.mxu0 0.0
    %322 = vmatprep.subr.mxu0 0.0
    %323 = vmatpush1.msra.mxu0 0.0
    %324 = vmatprep.subr.mxu0 0.0
    %325 = vmatpush1.msra.mxu0 0.0
    %326 = vmatprep.subr.mxu0 0.0
    %327 = vmatpush1.msra.mxu0 0.0
    %328 = vmatprep.subr.mxu0 0.0
    %329 = vmatpush1.msra.mxu0 0.0
    %330 = vmatprep.subr.mxu0 0.0
    %331 = vmatpush1.msra.mxu0 0.0
    %332 = vmatprep.subr.mxu0 0.0
    %333 = vmatpush1.msra.mxu0 0.0
    %334 = vmatprep.subr.mxu0 0.0
    %335 = vmatpush1.msra.mxu0 0.0
    %336 = vmatprep.subr.mxu0 %v310
    %337 = vmatpush1.msra.mxu0 %v307
    %338 = vmatprep.subr.mxu0 %v289
    %339 = vmatpush1.msra.mxu0 %v288
    %340 = vmatprep.subr.mxu0 %v287
    %341 = vmatpush1.msra.mxu0 %v286
    %342 = vmatprep.subr.mxu0 %v285
    %343 = vmatpush1.msra.mxu0 %v284
    %344 = vmatprep.subr.mxu0 0.0
    %345 = vmatpush2.msra.mxu0 0.0
    %346 = vmatprep.subr.mxu0 0.0
    %347 = vmatpush2.msra.mxu0 0.0
    %348 = vmatprep.subr.mxu0 0.0
    %349 = vmatpush2.msra.mxu0 0.0
    %350 = vmatprep.subr.mxu0 0.0
    %351 = vmatpush2.msra.mxu0 0.0
    %352 = vmatprep.subr.mxu0 0.0
    %353 = vmatpush2.msra.mxu0 0.0
    %354 = vmatprep.subr.mxu0 0.0
    %355 = vmatpush2.msra.mxu0 0.0
    %356 = vmatprep.subr.mxu0 0.0
    %357 = vmatpush2.msra.mxu0 0.0
    %358 = vmatprep.subr.mxu0 0.0
    %359 = vmatpush2.msra.mxu0 0.0
    %360 = vmatprep.subr.mxu0 0.0
    %361 = vmatpush2.msra.mxu0 0.0
    %362 = vmatprep.subr.mxu0 0.0
    %363 = vmatpush2.msra.mxu0 0.0
    %364 = vmatprep.subr.mxu0 0.0
    %365 = vmatpush2.msra.mxu0 0.0
    %366 = vmatprep.subr.mxu0 0.0
    %367 = vmatpush2.msra.mxu0 0.0
    %368 = vmatprep.subr.mxu0 0.0
    %369 = vmatpush2.msra.mxu0 0.0
    %370 = vmatprep.subr.mxu0 0.0
    %371 = vmatpush2.msra.mxu0 0.0
    %372 = vmatprep.subr.mxu0 0.0
    %373 = vmatpush2.msra.mxu0 0.0
    %374 = vmatprep.subr.mxu0 0.0
    %375 = vmatpush2.msra.mxu0 0.0
    %376 = vmatprep.mubr.f32.mxu0 0.0
    %377 = vmatmul.mubr.f32.gmra.mxu0 %v300
    %v378 = vpop.f32.mrf.mxu0
    %v379 = vadd.f32 0.0, %v378
    %v380 = vpop.f32.mrf.mxu0
    %v381 = vadd.f32 0.0, %v380
    %382 = vmatprep.mubr.f32.mxu0 0.0
    %383 = vmatmul.mubr.f32.gmra.mxu0 %v302
    %v384 = vpop.f32.mrf.mxu0
    %v385 = vadd.f32 0.0, %v384
    %v386 = vpop.f32.mrf.mxu0
    %v387 = vadd.f32 0.0, %v386
    %388 = vmatprep.mubr.f32.mxu0 0.0
    %389 = vmatmul.mubr.f32.gmra.mxu0 %v304
    %v390 = vpop.f32.mrf.mxu0
    %v391 = vadd.f32 0.0, %v390
    %v392 = vpop.f32.mrf.mxu0
    %v393 = vadd.f32 0.0, %v392
    %394 = vdwg.mxu0
    %v395 = vadd.f32 %v267, %v379
    %v396 = vadd.f32 %v269, %v381
    %v397 = vadd.f32 %v273, %v385
    %v398 = vadd.f32 %v275, %v387
    %v399 = vadd.f32 %v279, %v391
    %v400 = vadd.f32 %v281, %v393
    %s401 = scalar_lea.vmem [#allocation3], 192
    %v402 = vld [vmem:[%s401] sm:$0xff]
    %v403 = vld [vmem:[%s401 + $0x8] sm:$0xff]
    %v404 = vld [vmem:[%s401 + $0x10] sm:$0xff]
    %v405 = vld [vmem:[%s401 + $0x18] sm:$0xff]
    %v406 = vld [vmem:[%s401 + $0x20] sm:$0xff]
    %v407 = vld [vmem:[%s401 + $0x28] sm:$0xff]
    %v408 = vld [vmem:[%s401 + $0x30] sm:$0xf]
    %v409 = vld [vmem:[%s401 + $0x38] sm:$0xf]
    %vm410 = vcmask 1044480
    %v411 = vrot.slane %v58, 3
    %v412 = vrot.slane %v59, 3
    %v413 = vsel %vm410, %v411, %v412
    %v414 = vrot.slane %v60, 3
    %v415 = vsel %vm410, %v412, %v414
    %v416 = vrot.slane %v61, 3
    %v417 = vsel %vm410, %v414, %v416
    %v418 = vsel %vm91, %v413, 0
    %v420 = vsel %vm91, %v415, 0
    %v422 = vsel %vm91, %v417, 0
    %v425 = vsel %vm98, %v408, 0
    %v428 = vsel %vm98, %v409, 0
    %430 = vmatprep.subr.mxu0 0.0
    %431 = vmatpush1.msra.mxu0 0.0
    %432 = vmatprep.subr.mxu0 0.0
    %433 = vmatpush1.msra.mxu0 0.0
    %434 = vmatprep.subr.mxu0 0.0
    %435 = vmatpush1.msra.mxu0 0.0
    %436 = vmatprep.subr.mxu0 0.0
    %437 = vmatpush1.msra.mxu0 0.0
    %438 = vmatprep.subr.mxu0 0.0
    %439 = vmatpush1.msra.mxu0 0.0
    %440 = vmatprep.subr.mxu0 0.0
    %441 = vmatpush1.msra.mxu0 0.0
    %442 = vmatprep.subr.mxu0 0.0
    %443 = vmatpush1.msra.mxu0 0.0
    %444 = vmatprep.subr.mxu0 0.0
    %445 = vmatpush1.msra.mxu0 0.0
    %446 = vmatprep.subr.mxu0 0.0
    %447 = vmatpush1.msra.mxu0 0.0
    %448 = vmatprep.subr.mxu0 0.0
    %449 = vmatpush1.msra.mxu0 0.0
    %450 = vmatprep.subr.mxu0 0.0
    %451 = vmatpush1.msra.mxu0 0.0
    %452 = vmatprep.subr.mxu0 0.0
    %453 = vmatpush1.msra.mxu0 0.0
    %454 = vmatprep.subr.mxu0 %v428
    %455 = vmatpush1.msra.mxu0 %v425
    %456 = vmatprep.subr.mxu0 %v407
    %457 = vmatpush1.msra.mxu0 %v406
    %458 = vmatprep.subr.mxu0 %v405
    %459 = vmatpush1.msra.mxu0 %v404
    %460 = vmatprep.subr.mxu0 %v403
    %461 = vmatpush1.msra.mxu0 %v402
    %462 = vmatprep.subr.mxu0 0.0
    %463 = vmatpush2.msra.mxu0 0.0
    %464 = vmatprep.subr.mxu0 0.0
    %465 = vmatpush2.msra.mxu0 0.0
    %466 = vmatprep.subr.mxu0 0.0
    %467 = vmatpush2.msra.mxu0 0.0
    %468 = vmatprep.subr.mxu0 0.0
    %469 = vmatpush2.msra.mxu0 0.0
    %470 = vmatprep.subr.mxu0 0.0
    %471 = vmatpush2.msra.mxu0 0.0
    %472 = vmatprep.subr.mxu0 0.0
    %473 = vmatpush2.msra.mxu0 0.0
    %474 = vmatprep.subr.mxu0 0.0
    %475 = vmatpush2.msra.mxu0 0.0
    %476 = vmatprep.subr.mxu0 0.0
    %477 = vmatpush2.msra.mxu0 0.0
    %478 = vmatprep.subr.mxu0 0.0
    %479 = vmatpush2.msra.mxu0 0.0
    %480 = vmatprep.subr.mxu0 0.0
    %481 = vmatpush2.msra.mxu0 0.0
    %482 = vmatprep.subr.mxu0 0.0
    %483 = vmatpush2.msra.mxu0 0.0
    %484 = vmatprep.subr.mxu0 0.0
    %485 = vmatpush2.msra.mxu0 0.0
    %486 = vmatprep.subr.mxu0 0.0
    %487 = vmatpush2.msra.mxu0 0.0
    %488 = vmatprep.subr.mxu0 0.0
    %489 = vmatpush2.msra.mxu0 0.0
    %490 = vmatprep.subr.mxu0 0.0
    %491 = vmatpush2.msra.mxu0 0.0
    %492 = vmatprep.subr.mxu0 0.0
    %493 = vmatpush2.msra.mxu0 0.0
    %494 = vmatprep.mubr.f32.mxu0 0.0
    %495 = vmatmul.mubr.f32.gmra.mxu0 %v418
    %v496 = vpop.f32.mrf.mxu0
    %v497 = vadd.f32 0.0, %v496
    %v498 = vpop.f32.mrf.mxu0
    %v499 = vadd.f32 0.0, %v498
    %500 = vmatprep.mubr.f32.mxu0 0.0
    %501 = vmatmul.mubr.f32.gmra.mxu0 %v420
    %v502 = vpop.f32.mrf.mxu0
    %v503 = vadd.f32 0.0, %v502
    %v504 = vpop.f32.mrf.mxu0
    %v505 = vadd.f32 0.0, %v504
    %506 = vmatprep.mubr.f32.mxu0 0.0
    %507 = vmatmul.mubr.f32.gmra.mxu0 %v422
    %v508 = vpop.f32.mrf.mxu0
    %v509 = vadd.f32 0.0, %v508
    %v510 = vpop.f32.mrf.mxu0
    %v511 = vadd.f32 0.0, %v510
    %512 = vdwg.mxu0
    %v513 = vadd.f32 %v395, %v497
    %v514 = vadd.f32 %v396, %v499
    %v515 = vadd.f32 %v397, %v503
    %v516 = vadd.f32 %v398, %v505
    %v517 = vadd.f32 %v399, %v509
    %v518 = vadd.f32 %v400, %v511
    %s519 = scalar_lea.vmem [#allocation3], 256
    %v520 = vld [vmem:[%s519] sm:$0xff]
    %v521 = vld [vmem:[%s519 + $0x8] sm:$0xff]
    %v522 = vld [vmem:[%s519 + $0x10] sm:$0xff]
    %v523 = vld [vmem:[%s519 + $0x18] sm:$0xff]
    %v524 = vld [vmem:[%s519 + $0x20] sm:$0xff]
    %v525 = vld [vmem:[%s519 + $0x28] sm:$0xff]
    %v526 = vld [vmem:[%s519 + $0x30] sm:$0xf]
    %v527 = vld [vmem:[%s519 + $0x38] sm:$0xf]
    %v528 = vrot.slane %v58, 4
    %v529 = vrot.slane %v59, 4
    %v530 = vsel %vm98, %v528, %v529
    %v531 = vrot.slane %v60, 4
    %v532 = vsel %vm98, %v529, %v531
    %v533 = vrot.slane %v61, 4
    %v534 = vsel %vm98, %v531, %v533
    %v535 = vsel %vm91, %v530, 0
    %v537 = vsel %vm91, %v532, 0
    %v539 = vsel %vm91, %v534, 0
    %v542 = vsel %vm98, %v526, 0
    %v545 = vsel %vm98, %v527, 0
    %547 = vmatprep.subr.mxu0 0.0
    %548 = vmatpush1.msra.mxu0 0.0
    %549 = vmatprep.subr.mxu0 0.0
    %550 = vmatpush1.msra.mxu0 0.0
    %551 = vmatprep.subr.mxu0 0.0
    %552 = vmatpush1.msra.mxu0 0.0
    %553 = vmatprep.subr.mxu0 0.0
    %554 = vmatpush1.msra.mxu0 0.0
    %555 = vmatprep.subr.mxu0 0.0
    %556 = vmatpush1.msra.mxu0 0.0
    %557 = vmatprep.subr.mxu0 0.0
    %558 = vmatpush1.msra.mxu0 0.0
    %559 = vmatprep.subr.mxu0 0.0
    %560 = vmatpush1.msra.mxu0 0.0
    %561 = vmatprep.subr.mxu0 0.0
    %562 = vmatpush1.msra.mxu0 0.0
    %563 = vmatprep.subr.mxu0 0.0
    %564 = vmatpush1.msra.mxu0 0.0
    %565 = vmatprep.subr.mxu0 0.0
    %566 = vmatpush1.msra.mxu0 0.0
    %567 = vmatprep.subr.mxu0 0.0
    %568 = vmatpush1.msra.mxu0 0.0
    %569 = vmatprep.subr.mxu0 0.0
    %570 = vmatpush1.msra.mxu0 0.0
    %571 = vmatprep.subr.mxu0 %v545
    %572 = vmatpush1.msra.mxu0 %v542
    %573 = vmatprep.subr.mxu0 %v525
    %574 = vmatpush1.msra.mxu0 %v524
    %575 = vmatprep.subr.mxu0 %v523
    %576 = vmatpush1.msra.mxu0 %v522
    %577 = vmatprep.subr.mxu0 %v521
    %578 = vmatpush1.msra.mxu0 %v520
    %579 = vmatprep.subr.mxu0 0.0
    %580 = vmatpush2.msra.mxu0 0.0
    %581 = vmatprep.subr.mxu0 0.0
    %582 = vmatpush2.msra.mxu0 0.0
    %583 = vmatprep.subr.mxu0 0.0
    %584 = vmatpush2.msra.mxu0 0.0
    %585 = vmatprep.subr.mxu0 0.0
    %586 = vmatpush2.msra.mxu0 0.0
    %587 = vmatprep.subr.mxu0 0.0
    %588 = vmatpush2.msra.mxu0 0.0
    %589 = vmatprep.subr.mxu0 0.0
    %590 = vmatpush2.msra.mxu0 0.0
    %591 = vmatprep.subr.mxu0 0.0
    %592 = vmatpush2.msra.mxu0 0.0
    %593 = vmatprep.subr.mxu0 0.0
    %594 = vmatpush2.msra.mxu0 0.0
    %595 = vmatprep.subr.mxu0 0.0
    %596 = vmatpush2.msra.mxu0 0.0
    %597 = vmatprep.subr.mxu0 0.0
    %598 = vmatpush2.msra.mxu0 0.0
    %599 = vmatprep.subr.mxu0 0.0
    %600 = vmatpush2.msra.mxu0 0.0
    %601 = vmatprep.subr.mxu0 0.0
    %602 = vmatpush2.msra.mxu0 0.0
    %603 = vmatprep.subr.mxu0 0.0
    %604 = vmatpush2.msra.mxu0 0.0
    %605 = vmatprep.subr.mxu0 0.0
    %606 = vmatpush2.msra.mxu0 0.0
    %607 = vmatprep.subr.mxu0 0.0
    %608 = vmatpush2.msra.mxu0 0.0
    %609 = vmatprep.subr.mxu0 0.0
    %610 = vmatpush2.msra.mxu0 0.0
    %611 = vmatprep.mubr.f32.mxu0 0.0
    %612 = vmatmul.mubr.f32.gmra.mxu0 %v535
    %v613 = vpop.f32.mrf.mxu0
    %v614 = vadd.f32 0.0, %v613
    %v615 = vpop.f32.mrf.mxu0
    %v616 = vadd.f32 0.0, %v615
    %617 = vmatprep.mubr.f32.mxu0 0.0
    %618 = vmatmul.mubr.f32.gmra.mxu0 %v537
    %v619 = vpop.f32.mrf.mxu0
    %v620 = vadd.f32 0.0, %v619
    %v621 = vpop.f32.mrf.mxu0
    %v622 = vadd.f32 0.0, %v621
    %623 = vmatprep.mubr.f32.mxu0 0.0
    %624 = vmatmul.mubr.f32.gmra.mxu0 %v539
    %v625 = vpop.f32.mrf.mxu0
    %v626 = vadd.f32 0.0, %v625
    %v627 = vpop.f32.mrf.mxu0
    %v628 = vadd.f32 0.0, %v627
    %629 = vdwg.mxu0
    %v630 = vadd.f32 %v513, %v614
    %v631 = vadd.f32 %v514, %v616
    %v632 = vadd.f32 %v515, %v620
    %v633 = vadd.f32 %v516, %v622
    %v634 = vadd.f32 %v517, %v626
    %v635 = vadd.f32 %v518, %v628
    %v636 = vmax.f32 %v630, %v631
    %v637 = vmax.f32 %v632, %v633
    %v638 = vmax.f32 %v634, %v635
    %v639 = vld [vmem:[%s2] sm:$0xff]
    %v640 = vld [vmem:[%s2 + $0x8] sm:$0xff]
    %v641 = vld [vmem:[%s2 + $0x10] sm:$0xff]
    %vm642 = vcmask 195584
    %v644 = vsel %vm642, %v639, 0
    %v647 = vsel %vm642, %v640, 0
    %v650 = vsel %vm642, %v641, 0
    %652 = vmatprep.subr.mxu0 0.0
    %653 = vmatpush1.msra.mxu0 0.0
    %654 = vmatprep.subr.mxu0 0.0
    %655 = vmatpush1.msra.mxu0 0.0
    %656 = vmatprep.subr.mxu0 0.0
    %657 = vmatpush1.msra.mxu0 0.0
    %658 = vmatprep.subr.mxu0 0.0
    %659 = vmatpush1.msra.mxu0 0.0
    %660 = vmatprep.subr.mxu0 0.0
    %661 = vmatpush1.msra.mxu0 0.0
    %662 = vmatprep.subr.mxu0 0.0
    %663 = vmatpush1.msra.mxu0 0.0
    %664 = vmatprep.subr.mxu0 0.0
    %665 = vmatpush1.msra.mxu0 0.0
    %666 = vmatprep.subr.mxu0 0.0
    %667 = vmatpush1.msra.mxu0 0.0
    %668 = vmatprep.subr.mxu0 0.0
    %669 = vmatpush1.msra.mxu0 0.0
    %670 = vmatprep.subr.mxu0 0.0
    %671 = vmatpush1.msra.mxu0 0.0
    %672 = vmatprep.subr.mxu0 0.0
    %673 = vmatpush1.msra.mxu0 0.0
    %674 = vmatprep.subr.mxu0 0.0
    %675 = vmatpush1.msra.mxu0 0.0
    %676 = vmatprep.subr.mxu0 0.0
    %677 = vmatpush1.msra.mxu0 0.0
    %678 = vmatprep.subr.mxu0 0.0
    %679 = vmatpush1.msra.mxu0 %v638
    %680 = vmatprep.subr.mxu0 0.0
    %681 = vmatpush1.msra.mxu0 %v637
    %682 = vmatprep.subr.mxu0 0.0
    %683 = vmatpush1.msra.mxu0 %v636
    %684 = vmatprep.subr.mxu0 0.0
    %685 = vmatpush2.msra.mxu0 0.0
    %686 = vmatprep.subr.mxu0 0.0
    %687 = vmatpush2.msra.mxu0 0.0
    %688 = vmatprep.subr.mxu0 0.0
    %689 = vmatpush2.msra.mxu0 0.0
    %690 = vmatprep.subr.mxu0 0.0
    %691 = vmatpush2.msra.mxu0 0.0
    %692 = vmatprep.subr.mxu0 0.0
    %693 = vmatpush2.msra.mxu0 0.0
    %694 = vmatprep.subr.mxu0 0.0
    %695 = vmatpush2.msra.mxu0 0.0
    %696 = vmatprep.subr.mxu0 0.0
    %697 = vmatpush2.msra.mxu0 0.0
    %698 = vmatprep.subr.mxu0 0.0
    %699 = vmatpush2.msra.mxu0 0.0
    %700 = vmatprep.subr.mxu0 0.0
    %701 = vmatpush2.msra.mxu0 0.0
    %702 = vmatprep.subr.mxu0 0.0
    %703 = vmatpush2.msra.mxu0 0.0
    %704 = vmatprep.subr.mxu0 0.0
    %705 = vmatpush2.msra.mxu0 0.0
    %706 = vmatprep.subr.mxu0 0.0
    %707 = vmatpush2.msra.mxu0 0.0
    %708 = vmatprep.subr.mxu0 0.0
    %709 = vmatpush2.msra.mxu0 0.0
    %710 = vmatprep.subr.mxu0 0.0
    %711 = vmatpush2.msra.mxu0 0.0
    %712 = vmatprep.subr.mxu0 0.0
    %713 = vmatpush2.msra.mxu0 0.0
    %714 = vmatprep.subr.mxu0 0.0
    %715 = vmatpush2.msra.mxu0 0.0
    %716 = vmatprep.mubr.f32.mxu0 0.0
    %717 = vmatmul.mubr.f32.gmra.mxu0 %v644
    %v718 = vpop.f32.mrf.mxu0
    %v719 = vadd.f32 0.0, %v718
    %v720 = vpop.f32.mrf.mxu0
    %721 = vmatprep.mubr.f32.mxu0 0.0
    %722 = vmatmul.mubr.f32.gmra.mxu0 %v647
    %v723 = vpop.f32.mrf.mxu0
    %v724 = vadd.f32 0.0, %v723
    %v725 = vpop.f32.mrf.mxu0
    %726 = vmatprep.mubr.f32.mxu0 0.0
    %727 = vmatmul.mubr.f32.gmra.mxu0 %v650
    %v728 = vpop.f32.mrf.mxu0
    %v729 = vadd.f32 0.0, %v728
    %v730 = vpop.f32.mrf.mxu0
    %731 = vdwg.mxu0
    %v734 = vrot.slane %v724, 4
    %v735 = vrot.slane %v729, 4
    %v736 = vsel %vm98, %v734, %v735
    %v739 = vmax.f32 %v719, %v736
    %v740 = vmax.f32 %v724, %v735
    %v741 = vld [vmem:[%s3] sm:$0x1]
    %v743 = vlaneseq
    %v744 = vshrl.u32 %v743, 7
    %v745 = vsub.s32 0, %v744
    %v746 = vrot.slane %v741, %v745
    %v748 = vadd.f32 %v739, %v746
    %v749 = vadd.f32 %v740, %v746
    %v750 = vmax.f32 %v748, 0.0
    %v751 = vmax.f32 %v749, 0.0
    %v754 = vrot.slane %v750, 1
    %v755 = vrot.slane %v751, 1
    %v756 = vsel %vm83, %v754, %v755
    %v758 = vrot.slane %v750, 2
    %v759 = vrot.slane %v751, 2
    %v760 = vsel %vm292, %v758, %v759
    %v762 = vrot.slane %v750, 3
    %v763 = vrot.slane %v751, 3
    %v764 = vsel %vm410, %v762, %v763
    %v766 = vrot.slane %v750, 4
    %v767 = vrot.slane %v751, 4
    %v768 = vsel %vm98, %v766, %v767
    %v770 = vld [vmem:[%s4] sm:$0xff]
    %v771 = vld [vmem:[%s4 + $0x8] sm:$0xff]
    %v772 = vld [vmem:[%s4 + $0x10] sm:$0xff]
    %v773 = vld [vmem:[%s4 + $0x18] sm:$0xff]
    %v774 = vld [vmem:[%s4 + $0x20] sm:$0xff]
    %v775 = vld [vmem:[%s4 + $0x28] sm:$0xff]
    %v776 = vld [vmem:[%s4 + $0x30] sm:$0xff]
    %v777 = vld [vmem:[%s4 + $0x38] sm:$0xff]
    %v778 = vld [vmem:[%s4 + $0x40] sm:$0xff]
    %v779 = vld [vmem:[%s4 + $0x48] sm:$0xff]
    %v780 = vld [vmem:[%s4 + $0x50] sm:$0xff]
    %v781 = vld [vmem:[%s4 + $0x58] sm:$0xff]
    %v782 = vld [vmem:[%s4 + $0x60] sm:$0xff]
    %v783 = vld [vmem:[%s4 + $0x68] sm:$0xff]
    %v784 = vld [vmem:[%s4 + $0x70] sm:$0xff]
    %v785 = vld [vmem:[%s4 + $0x78] sm:$0xff]
    %v786 = vld [vmem:[%s4 + $0x80] sm:$0xff]
    %v787 = vld [vmem:[%s4 + $0x88] sm:$0xff]
    %v788 = vld [vmem:[%s4 + $0x90] sm:$0xff]
    %v789 = vld [vmem:[%s4 + $0x98] sm:$0xff]
    %v790 = vld [vmem:[%s4 + $0xa0] sm:$0xff]
    %v791 = vld [vmem:[%s4 + $0xa8] sm:$0xff]
    %v792 = vld [vmem:[%s4 + $0xb0] sm:$0xff]
    %v793 = vld [vmem:[%s4 + $0xb8] sm:$0xff]
    %v794 = vld [vmem:[%s4 + $0xc0] sm:$0xff]
    %v795 = vld [vmem:[%s4 + $0xc8] sm:$0xff]
    %v796 = vld [vmem:[%s4 + $0xd0] sm:$0xff]
    %v797 = vld [vmem:[%s4 + $0xd8] sm:$0xff]
    %v798 = vld [vmem:[%s4 + $0xe0] sm:$0xff]
    %v799 = vld [vmem:[%s4 + $0xe8] sm:$0xff]
    %v800 = vld [vmem:[%s4 + $0xf0] sm:$0xff]
    %v801 = vld [vmem:[%s4 + $0xf8] sm:$0xff]
    %v802 = vld [vmem:[%s4 + $0x100] sm:$0xff]
    %v803 = vld [vmem:[%s4 + $0x108] sm:$0xff]
    %v804 = vld [vmem:[%s4 + $0x110] sm:$0xff]
    %v805 = vld [vmem:[%s4 + $0x118] sm:$0xff]
    %v806 = vld [vmem:[%s4 + $0x120] sm:$0xff]
    %v807 = vld [vmem:[%s4 + $0x128] sm:$0xff]
    %v808 = vld [vmem:[%s4 + $0x130] sm:$0xff]
    %v809 = vld [vmem:[%s4 + $0x138] sm:$0xff]
    %v810 = vld [vmem:[%s4 + $0x140] sm:$0xff]
    %v811 = vld [vmem:[%s4 + $0x148] sm:$0xff]
    %v812 = vld [vmem:[%s4 + $0x150] sm:$0xff]
    %v813 = vld [vmem:[%s4 + $0x158] sm:$0xff]
    %v814 = vld [vmem:[%s4 + $0x160] sm:$0xff]
    %v815 = vld [vmem:[%s4 + $0x168] sm:$0xff]
    %v816 = vld [vmem:[%s4 + $0x170] sm:$0xff]
    %v817 = vld [vmem:[%s4 + $0x178] sm:$0xff]
    %v818 = vld [vmem:[%s4 + $0x180] sm:$0xff]
    %v819 = vld [vmem:[%s4 + $0x188] sm:$0xff]
    %v820 = vld [vmem:[%s4 + $0x190] sm:$0xff]
    %v821 = vld [vmem:[%s4 + $0x198] sm:$0xff]
    %v822 = vld [vmem:[%s4 + $0x1a0] sm:$0xff]
    %v823 = vld [vmem:[%s4 + $0x1a8] sm:$0xff]
    %v824 = vld [vmem:[%s4 + $0x1b0] sm:$0xff]
    %v825 = vld [vmem:[%s4 + $0x1b8] sm:$0xff]
    %v826 = vld [vmem:[%s4 + $0x1c0] sm:$0xff]
    %v827 = vld [vmem:[%s4 + $0x1c8] sm:$0xff]
    %v828 = vld [vmem:[%s4 + $0x1d0] sm:$0xff]
    %v829 = vld [vmem:[%s4 + $0x1d8] sm:$0xff]
    %v830 = vld [vmem:[%s4 + $0x1e0] sm:$0xff]
    %v831 = vld [vmem:[%s4 + $0x1e8] sm:$0xff]
    %v832 = vld [vmem:[%s4 + $0x1f0] sm:$0xff]
    %v833 = vld [vmem:[%s4 + $0x1f8] sm:$0xff]
    %v834 = vld [vmem:[%s4 + $0x200] sm:$0xff]
    %v835 = vld [vmem:[%s4 + $0x208] sm:$0xff]
    %v836 = vld [vmem:[%s4 + $0x210] sm:$0xff]
    %v837 = vld [vmem:[%s4 + $0x218] sm:$0xff]
    %v838 = vld [vmem:[%s4 + $0x220] sm:$0xff]
    %v839 = vld [vmem:[%s4 + $0x228] sm:$0xff]
    %v840 = vld [vmem:[%s4 + $0x230] sm:$0xff]
    %v841 = vld [vmem:[%s4 + $0x238] sm:$0xff]
    %v842 = vld [vmem:[%s4 + $0x240] sm:$0xff]
    %v843 = vld [vmem:[%s4 + $0x248] sm:$0xff]
    %v844 = vld [vmem:[%s4 + $0x250] sm:$0xff]
    %v845 = vld [vmem:[%s4 + $0x258] sm:$0xff]
    %v846 = vld [vmem:[%s4 + $0x260] sm:$0xff]
    %v847 = vld [vmem:[%s4 + $0x268] sm:$0xff]
    %v848 = vld [vmem:[%s4 + $0x270] sm:$0xff]
    %v849 = vld [vmem:[%s4 + $0x278] sm:$0xff]
    %v850 = vld [vmem:[%s4 + $0x280] sm:$0xff]
    %v851 = vld [vmem:[%s4 + $0x288] sm:$0xff]
    %v852 = vld [vmem:[%s4 + $0x290] sm:$0xff]
    %v853 = vld [vmem:[%s4 + $0x298] sm:$0xff]
    %v854 = vld [vmem:[%s4 + $0x2a0] sm:$0xff]
    %v855 = vld [vmem:[%s4 + $0x2a8] sm:$0xff]
    %v856 = vld [vmem:[%s4 + $0x2b0] sm:$0xff]
    %v857 = vld [vmem:[%s4 + $0x2b8] sm:$0xff]
    %v858 = vld [vmem:[%s4 + $0x2c0] sm:$0xff]
    %v859 = vld [vmem:[%s4 + $0x2c8] sm:$0xff]
    %v860 = vld [vmem:[%s4 + $0x2d0] sm:$0xff]
    %v861 = vld [vmem:[%s4 + $0x2d8] sm:$0xff]
    %v862 = vld [vmem:[%s4 + $0x2e0] sm:$0xff]
    %v863 = vld [vmem:[%s4 + $0x2e8] sm:$0xff]
    %v864 = vld [vmem:[%s4 + $0x2f0] sm:$0xff]
    %v865 = vld [vmem:[%s4 + $0x2f8] sm:$0xff]
    %v866 = vld [vmem:[%s4 + $0x300] sm:$0xff]
    %v867 = vld [vmem:[%s4 + $0x308] sm:$0xff]
    %v868 = vld [vmem:[%s4 + $0x310] sm:$0xff]
    %v869 = vld [vmem:[%s4 + $0x318] sm:$0xff]
    %v870 = vld [vmem:[%s4 + $0x320] sm:$0xff]
    %v871 = vld [vmem:[%s4 + $0x328] sm:$0xff]
    %v872 = vld [vmem:[%s4 + $0x330] sm:$0xff]
    %v873 = vld [vmem:[%s4 + $0x338] sm:$0xff]
    %v874 = vld [vmem:[%s4 + $0x340] sm:$0xff]
    %v875 = vld [vmem:[%s4 + $0x348] sm:$0xff]
    %v876 = vld [vmem:[%s4 + $0x350] sm:$0xff]
    %v877 = vld [vmem:[%s4 + $0x358] sm:$0xff]
    %v878 = vld [vmem:[%s4 + $0x360] sm:$0xff]
    %v879 = vld [vmem:[%s4 + $0x368] sm:$0xff]
    %v880 = vld [vmem:[%s4 + $0x370] sm:$0xff]
    %v881 = vld [vmem:[%s4 + $0x378] sm:$0xff]
    %v882 = vld [vmem:[%s4 + $0x380] sm:$0xff]
    %v883 = vld [vmem:[%s4 + $0x388] sm:$0xff]
    %v884 = vld [vmem:[%s4 + $0x390] sm:$0xff]
    %v885 = vld [vmem:[%s4 + $0x398] sm:$0xff]
    %v886 = vld [vmem:[%s4 + $0x3a0] sm:$0xff]
    %v887 = vld [vmem:[%s4 + $0x3a8] sm:$0xff]
    %v888 = vld [vmem:[%s4 + $0x3b0] sm:$0xff]
    %v889 = vld [vmem:[%s4 + $0x3b8] sm:$0xff]
    %v890 = vld [vmem:[%s4 + $0x3c0] sm:$0xff]
    %v891 = vld [vmem:[%s4 + $0x3c8] sm:$0xff]
    %v892 = vld [vmem:[%s4 + $0x3d0] sm:$0xff]
    %v893 = vld [vmem:[%s4 + $0x3d8] sm:$0xff]
    %v894 = vld [vmem:[%s4 + $0x3e0] sm:$0xff]
    %v895 = vld [vmem:[%s4 + $0x3e8] sm:$0xff]
    %v896 = vld [vmem:[%s4 + $0x3f0] sm:$0xff]
    %v897 = vld [vmem:[%s4 + $0x3f8] sm:$0xff]
    %v898 = vld [vmem:[%s4 + $0x400] sm:$0xff]
    %v899 = vld [vmem:[%s4 + $0x408] sm:$0xff]
    %v900 = vld [vmem:[%s4 + $0x410] sm:$0xff]
    %v901 = vld [vmem:[%s4 + $0x418] sm:$0xff]
    %v902 = vld [vmem:[%s4 + $0x420] sm:$0xff]
    %v903 = vld [vmem:[%s4 + $0x428] sm:$0xff]
    %v904 = vld [vmem:[%s4 + $0x430] sm:$0xff]
    %v905 = vld [vmem:[%s4 + $0x438] sm:$0xff]
    %v906 = vld [vmem:[%s4 + $0x440] sm:$0xff]
    %v907 = vld [vmem:[%s4 + $0x448] sm:$0xff]
    %v908 = vld [vmem:[%s4 + $0x450] sm:$0xff]
    %v909 = vld [vmem:[%s4 + $0x458] sm:$0xff]
    %v910 = vld [vmem:[%s4 + $0x460] sm:$0xff]
    %v911 = vld [vmem:[%s4 + $0x468] sm:$0xff]
    %v912 = vld [vmem:[%s4 + $0x470] sm:$0xff]
    %v913 = vld [vmem:[%s4 + $0x478] sm:$0xff]
    %v914 = vld [vmem:[%s4 + $0x480] sm:$0xff]
    %v915 = vld [vmem:[%s4 + $0x488] sm:$0xff]
    %v916 = vld [vmem:[%s4 + $0x490] sm:$0xff]
    %v917 = vld [vmem:[%s4 + $0x498] sm:$0xff]
    %v918 = vld [vmem:[%s4 + $0x4a0] sm:$0xff]
    %v919 = vld [vmem:[%s4 + $0x4a8] sm:$0xff]
    %v920 = vld [vmem:[%s4 + $0x4b0] sm:$0xff]
    %v921 = vld [vmem:[%s4 + $0x4b8] sm:$0xff]
    %v922 = vld [vmem:[%s4 + $0x4c0] sm:$0xff]
    %v923 = vld [vmem:[%s4 + $0x4c8] sm:$0xff]
    %v924 = vld [vmem:[%s4 + $0x4d0] sm:$0xff]
    %v925 = vld [vmem:[%s4 + $0x4d8] sm:$0xff]
    %v926 = vld [vmem:[%s4 + $0x4e0] sm:$0xff]
    %v927 = vld [vmem:[%s4 + $0x4e8] sm:$0xff]
    %v928 = vld [vmem:[%s4 + $0x4f0] sm:$0xff]
    %v929 = vld [vmem:[%s4 + $0x4f8] sm:$0xff]
    %930 = vmatprep.subr.mxu0 %v801
    %931 = vmatpush1.msra.mxu0 %v800
    %932 = vmatprep.subr.mxu0 %v799
    %933 = vmatpush1.msra.mxu0 %v798
    %934 = vmatprep.subr.mxu0 %v797
    %935 = vmatpush1.msra.mxu0 %v796
    %936 = vmatprep.subr.mxu0 %v795
    %937 = vmatpush1.msra.mxu0 %v794
    %938 = vmatprep.subr.mxu0 %v793
    %939 = vmatpush1.msra.mxu0 %v792
    %940 = vmatprep.subr.mxu0 %v791
    %941 = vmatpush1.msra.mxu0 %v790
    %942 = vmatprep.subr.mxu0 %v789
    %943 = vmatpush1.msra.mxu0 %v788
    %944 = vmatprep.subr.mxu0 %v787
    %945 = vmatpush1.msra.mxu0 %v786
    %946 = vmatprep.subr.mxu0 %v785
    %947 = vmatpush1.msra.mxu0 %v784
    %948 = vmatprep.subr.mxu0 %v783
    %949 = vmatpush1.msra.mxu0 %v782
    %950 = vmatprep.subr.mxu0 %v781
    %951 = vmatpush1.msra.mxu0 %v780
    %952 = vmatprep.subr.mxu0 %v779
    %953 = vmatpush1.msra.mxu0 %v778
    %954 = vmatprep.subr.mxu0 %v777
    %955 = vmatpush1.msra.mxu0 %v776
    %956 = vmatprep.subr.mxu0 %v775
    %957 = vmatpush1.msra.mxu0 %v774
    %958 = vmatprep.subr.mxu0 %v773
    %959 = vmatpush1.msra.mxu0 %v772
    %960 = vmatprep.subr.mxu0 %v771
    %961 = vmatpush1.msra.mxu0 %v770
    %962 = vmatprep.subr.mxu0 %v833
    %963 = vmatpush2.msra.mxu0 %v832
    %964 = vmatprep.subr.mxu0 %v831
    %965 = vmatpush2.msra.mxu0 %v830
    %966 = vmatprep.subr.mxu0 %v829
    %967 = vmatpush2.msra.mxu0 %v828
    %968 = vmatprep.subr.mxu0 %v827
    %969 = vmatpush2.msra.mxu0 %v826
    %970 = vmatprep.subr.mxu0 %v825
    %971 = vmatpush2.msra.mxu0 %v824
    %972 = vmatprep.subr.mxu0 %v823
    %973 = vmatpush2.msra.mxu0 %v822
    %974 = vmatprep.subr.mxu0 %v821
    %975 = vmatpush2.msra.mxu0 %v820
    %976 = vmatprep.subr.mxu0 %v819
    %977 = vmatpush2.msra.mxu0 %v818
    %978 = vmatprep.subr.mxu0 %v817
    %979 = vmatpush2.msra.mxu0 %v816
    %980 = vmatprep.subr.mxu0 %v815
    %981 = vmatpush2.msra.mxu0 %v814
    %982 = vmatprep.subr.mxu0 %v813
    %983 = vmatpush2.msra.mxu0 %v812
    %984 = vmatprep.subr.mxu0 %v811
    %985 = vmatpush2.msra.mxu0 %v810
    %986 = vmatprep.subr.mxu0 %v809
    %987 = vmatpush2.msra.mxu0 %v808
    %988 = vmatprep.subr.mxu0 %v807
    %989 = vmatpush2.msra.mxu0 %v806
    %990 = vmatprep.subr.mxu0 %v805
    %991 = vmatpush2.msra.mxu0 %v804
    %992 = vmatprep.subr.mxu0 %v803
    %993 = vmatpush2.msra.mxu0 %v802
    %994 = vmatprep.mubr.f32.mxu0 %v756
    %995 = vmatmul.mubr.f32.gmra.mxu0 %v750
    %v996 = vpop.f32.mrf.mxu0
    %v997 = vadd.f32 0.0, %v996
    %v998 = vpop.f32.mrf.mxu0
    %v999 = vadd.f32 0.0, %v998
    %1000 = vdwg.mxu0
    %1001 = vmatprep.subr.mxu0 %v865
    %1002 = vmatpush1.msra.mxu0 %v864
    %1003 = vmatprep.subr.mxu0 %v863
    %1004 = vmatpush1.msra.mxu0 %v862
    %1005 = vmatprep.subr.mxu0 %v861
    %1006 = vmatpush1.msra.mxu0 %v860
    %1007 = vmatprep.subr.mxu0 %v859
    %1008 = vmatpush1.msra.mxu0 %v858
    %1009 = vmatprep.subr.mxu0 %v857
    %1010 = vmatpush1.msra.mxu0 %v856
    %1011 = vmatprep.subr.mxu0 %v855
    %1012 = vmatpush1.msra.mxu0 %v854
    %1013 = vmatprep.subr.mxu0 %v853
    %1014 = vmatpush1.msra.mxu0 %v852
    %1015 = vmatprep.subr.mxu0 %v851
    %1016 = vmatpush1.msra.mxu0 %v850
    %1017 = vmatprep.subr.mxu0 %v849
    %1018 = vmatpush1.msra.mxu0 %v848
    %1019 = vmatprep.subr.mxu0 %v847
    %1020 = vmatpush1.msra.mxu0 %v846
    %1021 = vmatprep.subr.mxu0 %v845
    %1022 = vmatpush1.msra.mxu0 %v844
    %1023 = vmatprep.subr.mxu0 %v843
    %1024 = vmatpush1.msra.mxu0 %v842
    %1025 = vmatprep.subr.mxu0 %v841
    %1026 = vmatpush1.msra.mxu0 %v840
    %1027 = vmatprep.subr.mxu0 %v839
    %1028 = vmatpush1.msra.mxu0 %v838
    %1029 = vmatprep.subr.mxu0 %v837
    %1030 = vmatpush1.msra.mxu0 %v836
    %1031 = vmatprep.subr.mxu0 %v835
    %1032 = vmatpush1.msra.mxu0 %v834
    %1033 = vmatprep.subr.mxu0 %v897
    %1034 = vmatpush2.msra.mxu0 %v896
    %1035 = vmatprep.subr.mxu0 %v895
    %1036 = vmatpush2.msra.mxu0 %v894
    %1037 = vmatprep.subr.mxu0 %v893
    %1038 = vmatpush2.msra.mxu0 %v892
    %1039 = vmatprep.subr.mxu0 %v891
    %1040 = vmatpush2.msra.mxu0 %v890
    %1041 = vmatprep.subr.mxu0 %v889
    %1042 = vmatpush2.msra.mxu0 %v888
    %1043 = vmatprep.subr.mxu0 %v887
    %1044 = vmatpush2.msra.mxu0 %v886
    %1045 = vmatprep.subr.mxu0 %v885
    %1046 = vmatpush2.msra.mxu0 %v884
    %1047 = vmatprep.subr.mxu0 %v883
    %1048 = vmatpush2.msra.mxu0 %v882
    %1049 = vmatprep.subr.mxu0 %v881
    %1050 = vmatpush2.msra.mxu0 %v880
    %1051 = vmatprep.subr.mxu0 %v879
    %1052 = vmatpush2.msra.mxu0 %v878
    %1053 = vmatprep.subr.mxu0 %v877
    %1054 = vmatpush2.msra.mxu0 %v876
    %1055 = vmatprep.subr.mxu0 %v875
    %1056 = vmatpush2.msra.mxu0 %v874
    %1057 = vmatprep.subr.mxu0 %v873
    %1058 = vmatpush2.msra.mxu0 %v872
    %1059 = vmatprep.subr.mxu0 %v871
    %1060 = vmatpush2.msra.mxu0 %v870
    %1061 = vmatprep.subr.mxu0 %v869
    %1062 = vmatpush2.msra.mxu0 %v868
    %1063 = vmatprep.subr.mxu0 %v867
    %1064 = vmatpush2.msra.mxu0 %v866
    %1065 = vmatprep.mubr.f32.mxu0 %v764
    %1066 = vmatmul.mubr.f32.gmra.mxu0 %v760
    %v1067 = vpop.f32.mrf.mxu0
    %v1068 = vadd.f32 %v997, %v1067
    %v1069 = vpop.f32.mrf.mxu0
    %v1070 = vadd.f32 %v999, %v1069
    %1071 = vdwg.mxu0
    %1072 = vmatprep.subr.mxu0 %v929
    %1073 = vmatpush1.msra.mxu0 %v928
    %1074 = vmatprep.subr.mxu0 %v927
    %1075 = vmatpush1.msra.mxu0 %v926
    %1076 = vmatprep.subr.mxu0 %v925
    %1077 = vmatpush1.msra.mxu0 %v924
    %1078 = vmatprep.subr.mxu0 %v923
    %1079 = vmatpush1.msra.mxu0 %v922
    %1080 = vmatprep.subr.mxu0 %v921
    %1081 = vmatpush1.msra.mxu0 %v920
    %1082 = vmatprep.subr.mxu0 %v919
    %1083 = vmatpush1.msra.mxu0 %v918
    %1084 = vmatprep.subr.mxu0 %v917
    %1085 = vmatpush1.msra.mxu0 %v916
    %1086 = vmatprep.subr.mxu0 %v915
    %1087 = vmatpush1.msra.mxu0 %v914
    %1088 = vmatprep.subr.mxu0 %v913
    %1089 = vmatpush1.msra.mxu0 %v912
    %1090 = vmatprep.subr.mxu0 %v911
    %1091 = vmatpush1.msra.mxu0 %v910
    %1092 = vmatprep.subr.mxu0 %v909
    %1093 = vmatpush1.msra.mxu0 %v908
    %1094 = vmatprep.subr.mxu0 %v907
    %1095 = vmatpush1.msra.mxu0 %v906
    %1096 = vmatprep.subr.mxu0 %v905
    %1097 = vmatpush1.msra.mxu0 %v904
    %1098 = vmatprep.subr.mxu0 %v903
    %1099 = vmatpush1.msra.mxu0 %v902
    %1100 = vmatprep.subr.mxu0 %v901
    %1101 = vmatpush1.msra.mxu0 %v900
    %1102 = vmatprep.subr.mxu0 %v899
    %1103 = vmatpush1.msra.mxu0 %v898
    %1104 = vmatprep.subr.mxu0 0.0
    %1105 = vmatpush2.msra.mxu0 0.0
    %1106 = vmatprep.subr.mxu0 0.0
    %1107 = vmatpush2.msra.mxu0 0.0
    %1108 = vmatprep.subr.mxu0 0.0
    %1109 = vmatpush2.msra.mxu0 0.0
    %1110 = vmatprep.subr.mxu0 0.0
    %1111 = vmatpush2.msra.mxu0 0.0
    %1112 = vmatprep.subr.mxu0 0.0
    %1113 = vmatpush2.msra.mxu0 0.0
    %1114 = vmatprep.subr.mxu0 0.0
    %1115 = vmatpush2.msra.mxu0 0.0
    %1116 = vmatprep.subr.mxu0 0.0
    %1117 = vmatpush2.msra.mxu0 0.0
    %1118 = vmatprep.subr.mxu0 0.0
    %1119 = vmatpush2.msra.mxu0 0.0
    %1120 = vmatprep.subr.mxu0 0.0
    %1121 = vmatpush2.msra.mxu0 0.0
    %1122 = vmatprep.subr.mxu0 0.0
    %1123 = vmatpush2.msra.mxu0 0.0
    %1124 = vmatprep.subr.mxu0 0.0
    %1125 = vmatpush2.msra.mxu0 0.0
    %1126 = vmatprep.subr.mxu0 0.0
    %1127 = vmatpush2.msra.mxu0 0.0
    %1128 = vmatprep.subr.mxu0 0.0
    %1129 = vmatpush2.msra.mxu0 0.0
    %1130 = vmatprep.subr.mxu0 0.0
    %1131 = vmatpush2.msra.mxu0 0.0
    %1132 = vmatprep.subr.mxu0 0.0
    %1133 = vmatpush2.msra.mxu0 0.0
    %1134 = vmatprep.subr.mxu0 0.0
    %1135 = vmatpush2.msra.mxu0 0.0
    %1136 = vmatprep.mubr.f32.mxu0 0.0
    %1137 = vmatmul.mubr.f32.gmra.mxu0 %v768
    %v1138 = vpop.f32.mrf.mxu0
    %v1139 = vadd.f32 %v1068, %v1138
    %v1140 = vpop.f32.mrf.mxu0
    %v1141 = vadd.f32 %v1070, %v1140
    %1142 = vdwg.mxu0
    %v1143 = vmax.f32 %v1139, %v1141
    %v1144 = vld [vmem:[%s5] sm:$0x1]
    %v1146 = vlaneseq
    %v1147 = vshrl.u32 %v1146, 7
    %v1148 = vsub.s32 0, %v1147
    %v1149 = vrot.slane %v1144, %v1148
    %v1151 = vadd.f32 %v1143, %v1149
    %v1152 = vmax.f32 %v1151, 0.0
    %v1154 = vrot.slane %v1152, 1
    %v1156 = vmax.f32 %v1152, %v1154
    %v1158 = vrot.slane %v1156, 2
    %v1160 = vrot.slane %v1156, 4
    %v1162 = vrot.slane %v1156, 6
    %v1164 = vld [vmem:[%s6] sm:$0xff]
    %v1165 = vld [vmem:[%s6 + $0x8] sm:$0xff]
    %v1166 = vld [vmem:[%s6 + $0x10] sm:$0xff]
    %v1167 = vld [vmem:[%s6 + $0x18] sm:$0xff]
    %v1168 = vld [vmem:[%s6 + $0x20] sm:$0xff]
    %v1169 = vld [vmem:[%s6 + $0x28] sm:$0xff]
    %v1170 = vld [vmem:[%s6 + $0x30] sm:$0xff]
    %v1171 = vld [vmem:[%s6 + $0x38] sm:$0xff]
    %v1172 = vld [vmem:[%s6 + $0x40] sm:$0xff]
    %v1173 = vld [vmem:[%s6 + $0x48] sm:$0xff]
    %v1174 = vld [vmem:[%s6 + $0x50] sm:$0xff]
    %v1175 = vld [vmem:[%s6 + $0x58] sm:$0xff]
    %v1176 = vld [vmem:[%s6 + $0x60] sm:$0xff]
    %v1177 = vld [vmem:[%s6 + $0x68] sm:$0xff]
    %v1178 = vld [vmem:[%s6 + $0x70] sm:$0xff]
    %v1179 = vld [vmem:[%s6 + $0x78] sm:$0xff]
    %v1180 = vld [vmem:[%s6 + $0x80] sm:$0xff]
    %v1181 = vld [vmem:[%s6 + $0x88] sm:$0xff]
    %v1182 = vld [vmem:[%s6 + $0x90] sm:$0xff]
    %v1183 = vld [vmem:[%s6 + $0x98] sm:$0xff]
    %v1184 = vld [vmem:[%s6 + $0xa0] sm:$0xff]
    %v1185 = vld [vmem:[%s6 + $0xa8] sm:$0xff]
    %v1186 = vld [vmem:[%s6 + $0xb0] sm:$0xff]
    %v1187 = vld [vmem:[%s6 + $0xb8] sm:$0xff]
    %v1188 = vld [vmem:[%s6 + $0xc0] sm:$0xff]
    %v1189 = vld [vmem:[%s6 + $0xc8] sm:$0xff]
    %v1190 = vld [vmem:[%s6 + $0xd0] sm:$0xff]
    %v1191 = vld [vmem:[%s6 + $0xd8] sm:$0xff]
    %v1192 = vld [vmem:[%s6 + $0xe0] sm:$0xff]
    %v1193 = vld [vmem:[%s6 + $0xe8] sm:$0xff]
    %v1194 = vld [vmem:[%s6 + $0xf0] sm:$0xff]
    %v1195 = vld [vmem:[%s6 + $0xf8] sm:$0xff]
    %v1196 = vld [vmem:[%s6 + $0x100] sm:$0xff]
    %v1197 = vld [vmem:[%s6 + $0x108] sm:$0xff]
    %v1198 = vld [vmem:[%s6 + $0x110] sm:$0xff]
    %v1199 = vld [vmem:[%s6 + $0x118] sm:$0xff]
    %v1200 = vld [vmem:[%s6 + $0x120] sm:$0xff]
    %v1201 = vld [vmem:[%s6 + $0x128] sm:$0xff]
    %v1202 = vld [vmem:[%s6 + $0x130] sm:$0xff]
    %v1203 = vld [vmem:[%s6 + $0x138] sm:$0xff]
    %v1204 = vld [vmem:[%s6 + $0x140] sm:$0xff]
    %v1205 = vld [vmem:[%s6 + $0x148] sm:$0xff]
    %v1206 = vld [vmem:[%s6 + $0x150] sm:$0xff]
    %v1207 = vld [vmem:[%s6 + $0x158] sm:$0xff]
    %v1208 = vld [vmem:[%s6 + $0x160] sm:$0xff]
    %v1209 = vld [vmem:[%s6 + $0x168] sm:$0xff]
    %v1210 = vld [vmem:[%s6 + $0x170] sm:$0xff]
    %v1211 = vld [vmem:[%s6 + $0x178] sm:$0xff]
    %v1212 = vld [vmem:[%s6 + $0x180] sm:$0xff]
    %v1213 = vld [vmem:[%s6 + $0x188] sm:$0xff]
    %v1214 = vld [vmem:[%s6 + $0x190] sm:$0xff]
    %v1215 = vld [vmem:[%s6 + $0x198] sm:$0xff]
    %v1216 = vld [vmem:[%s6 + $0x1a0] sm:$0xff]
    %v1217 = vld [vmem:[%s6 + $0x1a8] sm:$0xff]
    %v1218 = vld [vmem:[%s6 + $0x1b0] sm:$0xff]
    %v1219 = vld [vmem:[%s6 + $0x1b8] sm:$0xff]
    %v1220 = vld [vmem:[%s6 + $0x1c0] sm:$0xff]
    %v1221 = vld [vmem:[%s6 + $0x1c8] sm:$0xff]
    %v1222 = vld [vmem:[%s6 + $0x1d0] sm:$0xff]
    %v1223 = vld [vmem:[%s6 + $0x1d8] sm:$0xff]
    %v1224 = vld [vmem:[%s6 + $0x1e0] sm:$0xff]
    %v1225 = vld [vmem:[%s6 + $0x1e8] sm:$0xff]
    %v1226 = vld [vmem:[%s6 + $0x1f0] sm:$0xff]
    %v1227 = vld [vmem:[%s6 + $0x1f8] sm:$0xff]
    %v1228 = vld [vmem:[%s7] sm:$0x1]
    %1229 = vmatprep.subr.mxu0 0.0
    %1230 = vmatpush1.msra.mxu0 %v1179
    %1231 = vmatprep.subr.mxu0 0.0
    %1232 = vmatpush1.msra.mxu0 %v1178
    %1233 = vmatprep.subr.mxu0 0.0
    %1234 = vmatpush1.msra.mxu0 %v1177
    %1235 = vmatprep.subr.mxu0 0.0
    %1236 = vmatpush1.msra.mxu0 %v1176
    %1237 = vmatprep.subr.mxu0 0.0
    %1238 = vmatpush1.msra.mxu0 %v1175
    %1239 = vmatprep.subr.mxu0 0.0
    %1240 = vmatpush1.msra.mxu0 %v1174
    %1241 = vmatprep.subr.mxu0 0.0
    %1242 = vmatpush1.msra.mxu0 %v1173
    %1243 = vmatprep.subr.mxu0 0.0
    %1244 = vmatpush1.msra.mxu0 %v1172
    %1245 = vmatprep.subr.mxu0 0.0
    %1246 = vmatpush1.msra.mxu0 %v1171
    %1247 = vmatprep.subr.mxu0 0.0
    %1248 = vmatpush1.msra.mxu0 %v1170
    %1249 = vmatprep.subr.mxu0 0.0
    %1250 = vmatpush1.msra.mxu0 %v1169
    %1251 = vmatprep.subr.mxu0 0.0
    %1252 = vmatpush1.msra.mxu0 %v1168
    %1253 = vmatprep.subr.mxu0 0.0
    %1254 = vmatpush1.msra.mxu0 %v1167
    %1255 = vmatprep.subr.mxu0 0.0
    %1256 = vmatpush1.msra.mxu0 %v1166
    %1257 = vmatprep.subr.mxu0 0.0
    %1258 = vmatpush1.msra.mxu0 %v1165
    %1259 = vmatprep.subr.mxu0 0.0
    %1260 = vmatpush1.msra.mxu0 %v1164
    %1261 = vmatprep.subr.mxu0 0.0
    %1262 = vmatpush2.msra.mxu0 %v1195
    %1263 = vmatprep.subr.mxu0 0.0
    %1264 = vmatpush2.msra.mxu0 %v1194
    %1265 = vmatprep.subr.mxu0 0.0
    %1266 = vmatpush2.msra.mxu0 %v1193
    %1267 = vmatprep.subr.mxu0 0.0
    %1268 = vmatpush2.msra.mxu0 %v1192
    %1269 = vmatprep.subr.mxu0 0.0
    %1270 = vmatpush2.msra.mxu0 %v1191
    %1271 = vmatprep.subr.mxu0 0.0
    %1272 = vmatpush2.msra.mxu0 %v1190
    %1273 = vmatprep.subr.mxu0 0.0
    %1274 = vmatpush2.msra.mxu0 %v1189
    %1275 = vmatprep.subr.mxu0 0.0
    %1276 = vmatpush2.msra.mxu0 %v1188
    %1277 = vmatprep.subr.mxu0 0.0
    %1278 = vmatpush2.msra.mxu0 %v1187
    %1279 = vmatprep.subr.mxu0 0.0
    %1280 = vmatpush2.msra.mxu0 %v1186
    %1281 = vmatprep.subr.mxu0 0.0
    %1282 = vmatpush2.msra.mxu0 %v1185
    %1283 = vmatprep.subr.mxu0 0.0
    %1284 = vmatpush2.msra.mxu0 %v1184
    %1285 = vmatprep.subr.mxu0 0.0
    %1286 = vmatpush2.msra.mxu0 %v1183
    %1287 = vmatprep.subr.mxu0 0.0
    %1288 = vmatpush2.msra.mxu0 %v1182
    %1289 = vmatprep.subr.mxu0 0.0
    %1290 = vmatpush2.msra.mxu0 %v1181
    %1291 = vmatprep.subr.mxu0 0.0
    %1292 = vmatpush2.msra.mxu0 %v1180
    %1293 = vmatprep.mubr.f32.mxu0 %v1158
    %1294 = vmatmul.mubr.f32.gmra.mxu0 %v1156
    %v1295 = vpop.f32.mrf.mxu0
    %v1296 = vadd.f32 %v1228, %v1295
    %v1297 = vpop.f32.mrf.mxu0
    %1298 = vdwg.mxu0
    %1299 = vmatprep.subr.mxu0 0.0
    %1300 = vmatpush1.msra.mxu0 %v1211
    %1301 = vmatprep.subr.mxu0 0.0
    %1302 = vmatpush1.msra.mxu0 %v1210
    %1303 = vmatprep.subr.mxu0 0.0
    %1304 = vmatpush1.msra.mxu0 %v1209
    %1305 = vmatprep.subr.mxu0 0.0
    %1306 = vmatpush1.msra.mxu0 %v1208
    %1307 = vmatprep.subr.mxu0 0.0
    %1308 = vmatpush1.msra.mxu0 %v1207
    %1309 = vmatprep.subr.mxu0 0.0
    %1310 = vmatpush1.msra.mxu0 %v1206
    %1311 = vmatprep.subr.mxu0 0.0
    %1312 = vmatpush1.msra.mxu0 %v1205
    %1313 = vmatprep.subr.mxu0 0.0
    %1314 = vmatpush1.msra.mxu0 %v1204
    %1315 = vmatprep.subr.mxu0 0.0
    %1316 = vmatpush1.msra.mxu0 %v1203
    %1317 = vmatprep.subr.mxu0 0.0
    %1318 = vmatpush1.msra.mxu0 %v1202
    %1319 = vmatprep.subr.mxu0 0.0
    %1320 = vmatpush1.msra.mxu0 %v1201
    %1321 = vmatprep.subr.mxu0 0.0
    %1322 = vmatpush1.msra.mxu0 %v1200
    %1323 = vmatprep.subr.mxu0 0.0
    %1324 = vmatpush1.msra.mxu0 %v1199
    %1325 = vmatprep.subr.mxu0 0.0
    %1326 = vmatpush1.msra.mxu0 %v1198
    %1327 = vmatprep.subr.mxu0 0.0
    %1328 = vmatpush1.msra.mxu0 %v1197
    %1329 = vmatprep.subr.mxu0 0.0
    %1330 = vmatpush1.msra.mxu0 %v1196
    %1331 = vmatprep.subr.mxu0 0.0
    %1332 = vmatpush2.msra.mxu0 %v1227
    %1333 = vmatprep.subr.mxu0 0.0
    %1334 = vmatpush2.msra.mxu0 %v1226
    %1335 = vmatprep.subr.mxu0 0.0
    %1336 = vmatpush2.msra.mxu0 %v1225
    %1337 = vmatprep.subr.mxu0 0.0
    %1338 = vmatpush2.msra.mxu0 %v1224
    %1339 = vmatprep.subr.mxu0 0.0
    %1340 = vmatpush2.msra.mxu0 %v1223
    %1341 = vmatprep.subr.mxu0 0.0
    %1342 = vmatpush2.msra.mxu0 %v1222
    %1343 = vmatprep.subr.mxu0 0.0
    %1344 = vmatpush2.msra.mxu0 %v1221
    %1345 = vmatprep.subr.mxu0 0.0
    %1346 = vmatpush2.msra.mxu0 %v1220
    %1347 = vmatprep.subr.mxu0 0.0
    %1348 = vmatpush2.msra.mxu0 %v1219
    %1349 = vmatprep.subr.mxu0 0.0
    %1350 = vmatpush2.msra.mxu0 %v1218
    %1351 = vmatprep.subr.mxu0 0.0
    %1352 = vmatpush2.msra.mxu0 %v1217
    %1353 = vmatprep.subr.mxu0 0.0
    %1354 = vmatpush2.msra.mxu0 %v1216
    %1355 = vmatprep.subr.mxu0 0.0
    %1356 = vmatpush2.msra.mxu0 %v1215
    %1357 = vmatprep.subr.mxu0 0.0
    %1358 = vmatpush2.msra.mxu0 %v1214
    %1359 = vmatprep.subr.mxu0 0.0
    %1360 = vmatpush2.msra.mxu0 %v1213
    %1361 = vmatprep.subr.mxu0 0.0
    %1362 = vmatpush2.msra.mxu0 %v1212
    %1363 = vmatprep.mubr.f32.mxu0 %v1162
    %1364 = vmatmul.mubr.f32.gmra.mxu0 %v1160
    %v1365 = vpop.f32.mrf.mxu0
    %v1366 = vadd.f32 %v1296, %v1365
    %v1367 = vpop.f32.mrf.mxu0
    %1368 = vdwg.mxu0
    %v1369 = vmax.f32 %v1366, 0.0
    %v1370 = vld [vmem:[%s8] sm:$0xff]
    %v1371 = vld [vmem:[%s8 + $0x8] sm:$0xff]
    %v1372 = vld [vmem:[%s8 + $0x10] sm:$0xff]
    %v1373 = vld [vmem:[%s8 + $0x18] sm:$0xff]
    %v1374 = vld [vmem:[%s8 + $0x20] sm:$0xff]
    %v1375 = vld [vmem:[%s8 + $0x28] sm:$0xff]
    %v1376 = vld [vmem:[%s8 + $0x30] sm:$0xff]
    %v1377 = vld [vmem:[%s8 + $0x38] sm:$0xff]
    %v1378 = vld [vmem:[%s8 + $0x40] sm:$0xff]
    %v1379 = vld [vmem:[%s8 + $0x48] sm:$0xff]
    %v1380 = vld [vmem:[%s8 + $0x50] sm:$0xff]
    %v1381 = vld [vmem:[%s8 + $0x58] sm:$0xff]
    %v1382 = vld [vmem:[%s8 + $0x60] sm:$0xff]
    %v1383 = vld [vmem:[%s8 + $0x68] sm:$0xff]
    %v1384 = vld [vmem:[%s8 + $0x70] sm:$0xff]
    %v1385 = vld [vmem:[%s9] sm:$0x1]
    %vm1386 = vcmask 982016
    %v1388 = vsel %vm1386, %v1369, 0
    %1390 = vmatprep.subr.mxu0 0.0
    %1391 = vmatpush1.msra.mxu0 0.0
    %1392 = vmatprep.subr.mxu0 0.0
    %1393 = vmatpush1.msra.mxu0 %v1384
    %1394 = vmatprep.subr.mxu0 0.0
    %1395 = vmatpush1.msra.mxu0 %v1383
    %1396 = vmatprep.subr.mxu0 0.0
    %1397 = vmatpush1.msra.mxu0 %v1382
    %1398 = vmatprep.subr.mxu0 0.0
    %1399 = vmatpush1.msra.mxu0 %v1381
    %1400 = vmatprep.subr.mxu0 0.0
    %1401 = vmatpush1.msra.mxu0 %v1380
    %1402 = vmatprep.subr.mxu0 0.0
    %1403 = vmatpush1.msra.mxu0 %v1379
    %1404 = vmatprep.subr.mxu0 0.0
    %1405 = vmatpush1.msra.mxu0 %v1378
    %1406 = vmatprep.subr.mxu0 0.0
    %1407 = vmatpush1.msra.mxu0 %v1377
    %1408 = vmatprep.subr.mxu0 0.0
    %1409 = vmatpush1.msra.mxu0 %v1376
    %1410 = vmatprep.subr.mxu0 0.0
    %1411 = vmatpush1.msra.mxu0 %v1375
    %1412 = vmatprep.subr.mxu0 0.0
    %1413 = vmatpush1.msra.mxu0 %v1374
    %1414 = vmatprep.subr.mxu0 0.0
    %1415 = vmatpush1.msra.mxu0 %v1373
    %1416 = vmatprep.subr.mxu0 0.0
    %1417 = vmatpush1.msra.mxu0 %v1372
    %1418 = vmatprep.subr.mxu0 0.0
    %1419 = vmatpush1.msra.mxu0 %v1371
    %1420 = vmatprep.subr.mxu0 0.0
    %1421 = vmatpush1.msra.mxu0 %v1370
    %1422 = vmatprep.subr.mxu0 0.0
    %1423 = vmatpush2.msra.mxu0 0.0
    %1424 = vmatprep.subr.mxu0 0.0
    %1425 = vmatpush2.msra.mxu0 0.0
    %1426 = vmatprep.subr.mxu0 0.0
    %1427 = vmatpush2.msra.mxu0 0.0
    %1428 = vmatprep.subr.mxu0 0.0
    %1429 = vmatpush2.msra.mxu0 0.0
    %1430 = vmatprep.subr.mxu0 0.0
    %1431 = vmatpush2.msra.mxu0 0.0
    %1432 = vmatprep.subr.mxu0 0.0
    %1433 = vmatpush2.msra.mxu0 0.0
    %1434 = vmatprep.subr.mxu0 0.0
    %1435 = vmatpush2.msra.mxu0 0.0
    %1436 = vmatprep.subr.mxu0 0.0
    %1437 = vmatpush2.msra.mxu0 0.0
    %1438 = vmatprep.subr.mxu0 0.0
    %1439 = vmatpush2.msra.mxu0 0.0
    %1440 = vmatprep.subr.mxu0 0.0
    %1441 = vmatpush2.msra.mxu0 0.0
    %1442 = vmatprep.subr.mxu0 0.0
    %1443 = vmatpush2.msra.mxu0 0.0
    %1444 = vmatprep.subr.mxu0 0.0
    %1445 = vmatpush2.msra.mxu0 0.0
    %1446 = vmatprep.subr.mxu0 0.0
    %1447 = vmatpush2.msra.mxu0 0.0
    %1448 = vmatprep.subr.mxu0 0.0
    %1449 = vmatpush2.msra.mxu0 0.0
    %1450 = vmatprep.subr.mxu0 0.0
    %1451 = vmatpush2.msra.mxu0 0.0
    %1452 = vmatprep.subr.mxu0 0.0
    %1453 = vmatpush2.msra.mxu0 0.0
    %1454 = vmatprep.mubr.f32.mxu0 0.0
    %1455 = vmatmul.mubr.f32.gmra.mxu0 %v1388
    %v1456 = vpop.f32.mrf.mxu0
    %v1457 = vadd.f32 %v1385, %v1456
    %v1458 = vpop.f32.mrf.mxu0
    %1459 = vdwg.mxu0
    %v1460 = vmax.f32 %v1457, 0.0
    %v1461 = vld [vmem:[%s10] sm:$0xff]
    %v1462 = vld [vmem:[%s10 + $0x8] sm:$0xff]
    %v1463 = vld [vmem:[%s10 + $0x10] sm:$0xff]
    %v1464 = vld [vmem:[%s10 + $0x18] sm:$0xff]
    %v1465 = vld [vmem:[%s10 + $0x20] sm:$0xff]
    %v1466 = vld [vmem:[%s10 + $0x28] sm:$0xff]
    %v1467 = vld [vmem:[%s10 + $0x30] sm:$0xff]
    %v1468 = vld [vmem:[%s10 + $0x38] sm:$0xff]
    %v1469 = vld [vmem:[%s10 + $0x40] sm:$0xff]
    %v1470 = vld [vmem:[%s10 + $0x48] sm:$0xff]
    %v1471 = vld [vmem:[%s10 + $0x50] sm:$0xf]
    %v1472 = vld [vmem:[#allocation2] sm:$0x1]
    %vm1473 = vcmask 687104
    %v1475 = vsel %vm1473, %v1460, 0
    %v1478 = vsel %vm98, %v1471, 0
    %1480 = vmatprep.subr.mxu0 0.0
    %1481 = vmatpush1.msra.mxu0 0.0
    %1482 = vmatprep.subr.mxu0 0.0
    %1483 = vmatpush1.msra.mxu0 0.0
    %1484 = vmatprep.subr.mxu0 0.0
    %1485 = vmatpush1.msra.mxu0 0.0
    %1486 = vmatprep.subr.mxu0 0.0
    %1487 = vmatpush1.msra.mxu0 0.0
    %1488 = vmatprep.subr.mxu0 0.0
    %1489 = vmatpush1.msra.mxu0 0.0
    %1490 = vmatprep.subr.mxu0 0.0
    %1491 = vmatpush1.msra.mxu0 %v1478
    %1492 = vmatprep.subr.mxu0 0.0
    %1493 = vmatpush1.msra.mxu0 %v1470
    %1494 = vmatprep.subr.mxu0 0.0
    %1495 = vmatpush1.msra.mxu0 %v1469
    %1496 = vmatprep.subr.mxu0 0.0
    %1497 = vmatpush1.msra.mxu0 %v1468
    %1498 = vmatprep.subr.mxu0 0.0
    %1499 = vmatpush1.msra.mxu0 %v1467
    %1500 = vmatprep.subr.mxu0 0.0
    %1501 = vmatpush1.msra.mxu0 %v1466
    %1502 = vmatprep.subr.mxu0 0.0
    %1503 = vmatpush1.msra.mxu0 %v1465
    %1504 = vmatprep.subr.mxu0 0.0
    %1505 = vmatpush1.msra.mxu0 %v1464
    %1506 = vmatprep.subr.mxu0 0.0
    %1507 = vmatpush1.msra.mxu0 %v1463
    %1508 = vmatprep.subr.mxu0 0.0
    %1509 = vmatpush1.msra.mxu0 %v1462
    %1510 = vmatprep.subr.mxu0 0.0
    %1511 = vmatpush1.msra.mxu0 %v1461
    %1512 = vmatprep.subr.mxu0 0.0
    %1513 = vmatpush2.msra.mxu0 0.0
    %1514 = vmatprep.subr.mxu0 0.0
    %1515 = vmatpush2.msra.mxu0 0.0
    %1516 = vmatprep.subr.mxu0 0.0
    %1517 = vmatpush2.msra.mxu0 0.0
    %1518 = vmatprep.subr.mxu0 0.0
    %1519 = vmatpush2.msra.mxu0 0.0
    %1520 = vmatprep.subr.mxu0 0.0
    %1521 = vmatpush2.msra.mxu0 0.0
    %1522 = vmatprep.subr.mxu0 0.0
    %1523 = vmatpush2.msra.mxu0 0.0
    %1524 = vmatprep.subr.mxu0 0.0
    %1525 = vmatpush2.msra.mxu0 0.0
    %1526 = vmatprep.subr.mxu0 0.0
    %1527 = vmatpush2.msra.mxu0 0.0
    %1528 = vmatprep.subr.mxu0 0.0
    %1529 = vmatpush2.msra.mxu0 0.0
    %1530 = vmatprep.subr.mxu0 0.0
    %1531 = vmatpush2.msra.mxu0 0.0
    %1532 = vmatprep.subr.mxu0 0.0
    %1533 = vmatpush2.msra.mxu0 0.0
    %1534 = vmatprep.subr.mxu0 0.0
    %1535 = vmatpush2.msra.mxu0 0.0
    %1536 = vmatprep.subr.mxu0 0.0
    %1537 = vmatpush2.msra.mxu0 0.0
    %1538 = vmatprep.subr.mxu0 0.0
    %1539 = vmatpush2.msra.mxu0 0.0
    %1540 = vmatprep.subr.mxu0 0.0
    %1541 = vmatpush2.msra.mxu0 0.0
    %1542 = vmatprep.subr.mxu0 0.0
    %1543 = vmatpush2.msra.mxu0 0.0
    %1544 = vmatprep.mubr.f32.mxu0 0.0
    %1545 = vmatmul.mubr.f32.gmra.mxu0 %v1475
    %v1546 = vpop.f32.mrf.mxu0
    %v1547 = vadd.f32 %v1472, %v1546
    %v1548 = vpop.f32.mrf.mxu0
    %1549 = vdwg.mxu0
    %v1550 = vxor.u32 %v1547, 2147483648
    %v1551 = vmul.f32 %v1550, 1.442695
    %v1552 = vpow.pop %v1551
    %v1553 = vadd.f32 %v1552, 1.0
    %v1554 = vrcp.pop %v1553
    %v1555 = vmul.f32 1.0, %v1554
    %vm1556 = vcmask 0
    %1557 = vst.msk [vmem:[#allocation6] sm:$0x1] %vm1556, %v1555
    // Predicated region
    $region54: #{dangerordr_cnn_forward.1} parent=1 // pred_check
      _
    $region55: #{dangerordr_cnn_forward.1} parent=1 // pred_check_branch
      %1559 = sbr.rel (0) target = $region57
    $region56: #{dangerordr_cnn_forward.1} parent=1 // pred_region
      %s1561 = ssub.s32 16, 16
      %1562 = vsyncadd [#allocation5], %s1561
      %s1564 = sshll.u32 [#allocation6], 4
      %s1565 = int_to_ptr.vmem [resolvable:$true] %s1564
      %1567 = dma.vmem_to_hbm [thread:$0]  %s1565, 16, %s12, [#allocation5]
    $region57: #{dangerordr_cnn_forward.1} parent=1 // pred_fallthru
      _
    // Predicated region
    $region58: #{dangerordr_cnn_forward.1} parent=1 // pred_check
      _
    $region59: #{dangerordr_cnn_forward.1} parent=1 // pred_check_branch
      %1569 = sbr.rel (0) target = $region61
    $region60: #{dangerordr_cnn_forward.1} parent=1 // pred_region
      %1570 = dma.done [#allocation5], 16
    $region61: #{dangerordr_cnn_forward.1} parent=1 // pred_fallthru
      _
    %1571 = vsyncpa [#allocation4], 1
    %1572 = vsyncpa [#allocation5], 1

</llo_original>
